<compile_context>
chip_gen: v5e
topology: v5e:2x2
jax: 0.10.0
libtpu: 0.0.40
codegen_flags: <defaults>
</compile_context>

<pallas_src>
import functools

import numpy as np
import jax
import jax.numpy as jnp
from jax.experimental import pallas as pl
from jax.experimental.pallas import tpu as pltpu

EPS = 1e-5
NEG_SLOPE = 0.2
LANE = 128


# ----------------------------- small helpers -------------------------------------------
def _round_up(v, m):
    return ((v + m - 1) // m) * m


def _leaky(x):
    return jnp.where(x >= 0, x, NEG_SLOPE * x)


def _mm(a, w):
    """(N, R, C) @ (C, D) bf16 -> (N, R, D) f32 on the MXU.  R must be a multiple of 8."""
    n, r, c = a.shape
    y = jax.lax.dot_general(
        a.reshape(n * r, c).astype(jnp.bfloat16), w,
        (((1,), (0,)), ((), ())), preferred_element_type=jnp.float32)
    return y.reshape(n, r, w.shape[1])


def _shift_up(a, fill_last):
    """result[m] = a[m+1] for m < T-1, result[T-1] = fill_last.  a: (N,T,C), fill: (N,1,C)."""
    return jnp.concatenate([a[:, 1:, :], fill_last], axis=1)


def _shift_down(a, fill_first):
    """result[m] = a[m-1] for m > 0, result[0] = fill_first."""
    return jnp.concatenate([fill_first, a[:, :-1, :]], axis=1)


# ----------------------------- pass 1: conv1 + BN2 batch statistics ---------------------
def _conv1_stats_kernel(x_ref, xr_ref, pv_ref, w1_ref, out_ref):
    cin = x_ref.shape[-1]
    cp = w1_ref.shape[-1] // 3
    g = pl.program_id(0) * pl.num_programs(1) + pl.program_id(1)      # global L-tile index
    last = g == pl.num_programs(0) * pl.num_programs(1) - 1

    s1 = pv_ref[0:1, :cin]
    t1 = pv_ref[1:2, :cin]
    w1 = w1_ref[...]

    # norm1 (folded scale/shift) + LeakyReLU, conv1 taps as one concat-weight matmul
    h = _leaky(x_ref[...].astype(jnp.float32) * s1 + t1)              # (N, T, Cin)
    H = _mm(h, w1)                                                    # (N, T, 3*Cp)
    hr = _leaky(xr_ref[...].astype(jnp.float32) * s1 + t1)            # right-halo 8-row block
    Hr0 = _mm(hr, w1[:, :cp])                                         # tap0 columns only
    halo = jnp.where(last, 0.0, Hr0[:, 0:1, :])                       # h[t0+T] @ W1[0], 0 past end

    # even / odd conv1 phases WITHOUT the bias (shifted single-pass statistics)
    he = H[:, :, cp:2 * cp]
    ho = H[:, :, 2 * cp:] + _shift_up(H[:, :, :cp], halo)

    s = (jnp.sum(he, axis=(0, 1), keepdims=True)[0]
         + jnp.sum(ho, axis=(0, 1), keepdims=True)[0])                # (1, Cp)
    ss = (jnp.sum(he * he, axis=(0, 1), keepdims=True)[0]
          + jnp.sum(ho * ho, axis=(0, 1), keepdims=True)[0])          # (1, Cp)

    @pl.when(pl.program_id(1) == 0)
    def _():
        out_ref[...] = jnp.zeros_like(out_ref)

    out_ref[...] += jnp.concatenate([s, ss], axis=0)[None]            # (1, 2, Cp)


# ----------------------------- pass 2: fused block + shortcut ---------------------------
def _final_kernel(x_ref, xl_ref, xr_ref, pv_ref, w1_ref, w2_ref, wn_ref, out_ref):
    i = pl.program_id(0)
    first = i == 0
    last = i == pl.num_programs(0) - 1

    n, t, cin = x_ref.shape
    cp = w1_ref.shape[-1] // 3

    s1 = pv_ref[0:1, :cin]
    t1 = pv_ref[1:2, :cin]
    s2 = pv_ref[2:3, :cp]
    t2 = pv_ref[3:4, :cp]
    b1 = pv_ref[4:5, :cp]
    b2 = pv_ref[5:6, :cp]
    bn = pv_ref[6:7, :cp]

    w1 = w1_ref[...]
    w2 = w2_ref[...]
    wn = wn_ref[...]

    x = x_ref[...].astype(jnp.float32)             # rows t0 .. t0+T-1
    xl8 = xl_ref[...].astype(jnp.float32)          # rows t0-8 .. t0-1   (clamped at the edge)
    xr8 = xr_ref[...].astype(jnp.float32)          # rows t0+T .. t0+T+7 (clamped at the edge)

    # ---- nin_shortcut: ConvTranspose1d(k=3, s=2, p=1, op=1) on raw x ----
    Xs = _mm(x, wn)                                # (N, T, 3*Cp)
    Xr0 = _mm(xr8, wn[:, :cp])                     # x[t0+T] @ Wn[0] for the odd phase
    xs_halo0 = jnp.where(last, 0.0, Xr0[:, 0:1, :])

    # ---- norm1 + LeakyReLU + conv1 phases ----
    h = _leaky(x * s1 + t1)
    H = _mm(h, w1)                                 # (N, T, 3*Cp)
    hh = _leaky(jnp.concatenate([xl8, xr8], axis=1) * s1 + t1)        # 16 halo rows
    Hh = _mm(hh, w1)                               # (N, 16, 3*Cp)
    Hl = Hh[:, 7:8, :]                             # h[t0-1] @ W1 taps
    Hr = jnp.where(last, 0.0, Hh[:, 8:9, :])       # h[t0+T] @ W1 taps, zero past the end

    he = H[:, :, cp:2 * cp] + b1                                          # even phase
    ho = H[:, :, 2 * cp:] + _shift_up(H[:, :, :cp], Hr[:, :, :cp]) + b1   # odd  phase

    # ---- norm2 + LeakyReLU (Dropout treated as identity) ----
    # TODO(synk): stochastic Dropout(p>0) in train mode is not reproducible; identity used.
    he = _leaky(he * s2 + t2)
    ho = _leaky(ho * s2 + t2)

    # boundary phase rows consumed by conv2 (zeroed outside the signal AFTER the nonlinearity)
    ho_left = _leaky((Hl[:, :, 2 * cp:] + H[:, 0:1, :cp] + b1) * s2 + t2)
    ho_left = jnp.where(first, 0.0, ho_left)       # ho[-1] == 0
    he_right = _leaky((Hr[:, :, cp:2 * cp] + b1) * s2 + t2)
    he_right = jnp.where(last, 0.0, he_right)      # he[L]  == 0

    # ---- conv2 (k=3, s=1, p=1): single MXU call over [he ; ho ; boundary rows] ----
    u = jnp.concatenate(
        [he, ho, ho_left, he_right, jnp.zeros((n, 6, cp), jnp.float32)], axis=1)
    U = _mm(u, w2)                                 # (N, 2T+8, 3*Cp)
    He2 = U[:, :t, :]
    Ho2 = U[:, t:2 * t, :]
    hoL2 = U[:, 2 * t:2 * t + 1, 2 * cp:]          # ho[t0-1] @ W2[2]
    heR2 = U[:, 2 * t + 1:2 * t + 2, :cp]          # he[t0+T] @ W2[0]

    #   out[2m]   = sc_e[m] + ho[m]@W2[0]   + he[m]@W2[1] + ho[m-1]@W2[2] + b2
    #   out[2m+1] = sc_o[m] + he[m+1]@W2[0] + ho[m]@W2[1] + he[m]@W2[2]   + b2
    out_e = (Xs[:, :, cp:2 * cp] + bn + b2
             + Ho2[:, :, :cp] + He2[:, :, cp:2 * cp]
             + _shift_down(Ho2[:, :, 2 * cp:], hoL2))
    out_o = (Xs[:, :, 2 * cp:] + bn + b2
             + Ho2[:, :, cp:2 * cp] + He2[:, :, 2 * cp:]
             + _shift_up(Xs[:, :, :cp] + He2[:, :, :cp], xs_halo0 + heR2))

    # lane layout [even | odd]: the stride-2 interleave in the wrapper is a plain reshape.
    out_ref[...] = jnp.concatenate([out_e, out_o], axis=-1).astype(out_ref.dtype)


# ----------------------------- wrapper ---------------------------------------------------
def _tpu_vmem_bytes():
    try:
        fn = getattr(pltpu, "get_tpu_info", None)
        if fn is not None:
            info = fn()
            for name in ("vmem_capacity_bytes", "vmem_bytes", "vmem_size_bytes"):
                v = getattr(info, name, None)
                if v:
                    return int(v)
    except Exception:
        pass
    return 64 << 20            # conservative default: v7x per-core physical VMEM


def _pick_l_tile(L, l_tile, bytes_per_row, budget):
    assert L % 8 == 0, "length axis must be a multiple of 8 (TPU sublane tiling)"
    if l_tile is None:
        l_tile = budget // max(1, bytes_per_row)
    l_tile = min(L, max(8, (int(l_tile) // 8) * 8))
    while L % l_tile:
        l_tile -= 8
    return l_tile


def _cat_taps(w, cp):
    """PyTorch (C_in_, C_out, 3) -> (C_in_, 3*cp) bf16; tap k occupies columns [k*cp, k*cp+C_out)."""
    cin_, cout, _ = w.shape
    wt = jnp.transpose(w.astype(jnp.float32), (2, 0, 1))              # (3, C_in_, C_out)
    wt = jnp.pad(wt, ((0, 0), (0, 0), (0, cp - cout)))                # lane-align each tap block
    return jnp.transpose(wt, (1, 0, 2)).reshape(cin_, 3 * cp).astype(jnp.bfloat16)


def _pack_rows(rows, cvec):
    """Pack up to 8 per-channel vectors into one (8, cvec) f32 array (one DMA per grid step)."""
    packed = []
    for r in rows:
        r = jnp.asarray(r, jnp.float32).reshape(-1)
        packed.append(jnp.pad(r, (0, cvec - r.shape[0])))
    while len(packed) < 8:
        packed.append(jnp.zeros((cvec,), jnp.float32))
    return jnp.stack(packed)


def trans_resnet_block(x, params, *, l_tile=None, stats_l_tile=None,
                       channels_last=False, out_dtype=jnp.float32):
    """TransResnetBlock forward (downsample=True, conv_shortcut=False, temb=None).

    x: (N, Cin, L) PyTorch NCL (or (N, L, Cin) if channels_last=True, which skips both
    HBM-round-trip transposes).  Returns (N, Cout, 2L) (or (N, 2L, Cout) channels-last).
    """
    if channels_last:
        N, L, Cin = x.shape
        mean1 = jnp.mean(x, axis=(0, 1))
        var1 = jnp.var(x, axis=(0, 1))
        x_nlc = x
    else:
        N, Cin, L = x.shape
        # BN1 training-mode batch stats on the raw f32 input (exact two-pass variance); this
        # replaces the old stats-only Pallas pass and fuses with the layout change below.
        # TODO(synk): inference with running stats is not implemented.
        mean1 = jnp.mean(x, axis=(0, 2))
        var1 = jnp.var(x, axis=(0, 2))
        x_nlc = jnp.transpose(x, (0, 2, 1))
    xb = x_nlc.astype(jnp.bfloat16)                      # bf16 HBM I/O for both Pallas passes

    Cout = params["w1"].shape[1]                         # w1 stored PyTorch-style (Cin, Cout, 3)
    Cp = _round_up(Cout, LANE)                           # lane-aligned tap blocks / output
    Cvec = max(Cp, Cin)

    vmem = _tpu_vmem_bytes()
    budget = vmem // 4
    vmem_lim = (vmem * 3) // 4                           # raise scoped VMEM (96MiB v5e/v6e, 48MiB v7x)
    T3 = _pick_l_tile(L, l_tile, N * (8 * Cin + 128 * Cp), budget)       # fused pass
    T2 = _pick_l_tile(L, stats_l_tile, N * (8 * Cin + 40 * Cp), budget)  # stats pass (bigger tile)
    nlb = L // 8

    # folded BN1 + concatenated, lane-padded conv weights
    s1 = params["g1"].astype(jnp.float32) * jax.lax.rsqrt(var1 + EPS)
    t1 = params["be1"].astype(jnp.float32) - mean1 * s1
    w1c = _cat_taps(params["w1"], Cp)                                    # (Cin, 3Cp)
    wnc = _cat_taps(params["wn"], Cp)                                    # (Cin, 3Cp)
    w2c = _cat_taps(jnp.pad(params["w2"].astype(jnp.float32),
                            ((0, Cp - Cout), (0, 0), (0, 0))), Cp)       # (Cp, 3Cp)

    # ---- pass 1 (Pallas): conv1 + BN2 batch statistics (bias-free shifted sums) ----
    nlt2 = L // T2
    npar = 2 if nlt2 % 2 == 0 else 1            # v7x megacore: one partial accumulator per core
    steps2 = nlt2 // npar
    ntb2 = T2 // 8
    pvec2 = _pack_rows([s1, t1], Cvec)
    stats_raw = pl.pallas_call(
        _conv1_stats_kernel,
        grid=(npar, steps2),
        in_specs=[
            pl.BlockSpec((N, T2, Cin), lambda c, j: (0, c * steps2 + j, 0)),
            pl.BlockSpec((N, 8, Cin),
                         lambda c, j: (0, jnp.minimum((c * steps2 + j + 1) * ntb2, nlb - 1), 0)),
            pl.BlockSpec((8, Cvec), lambda c, j: (0, 0)),
            pl.BlockSpec((Cin, 3 * Cp), lambda c, j: (0, 0)),
        ],
        out_specs=pl.BlockSpec((1, 2, Cp), lambda c, j: (c, 0, 0)),
        out_shape=jax.ShapeDtypeStruct((npar, 2, Cp), jnp.float32),
        compiler_params=pltpu.CompilerParams(
            dimension_semantics=("parallel", "arbitrary"), vmem_limit_bytes=vmem_lim),
    )(xb, xb, pvec2, w1c)
    stats2 = jnp.sum(stats_raw, axis=0)[:, :Cout]        # (2, Cout): [sum, sum_sq] of (h1 - b1)

    # fold BN2 (stats accumulated with the conv bias subtracted -> better-conditioned variance)
    b1v = params["b1"].astype(jnp.float32)
    cnt2 = float(N * 2 * L)
    mshift = stats2[0] / cnt2
    mean2 = b1v + mshift
    var2 = jnp.maximum(stats2[1] / cnt2 - mshift * mshift, 0.0)
    s2 = params["g2"].astype(jnp.float32) * jax.lax.rsqrt(var2 + EPS)
    t2 = params["be2"].astype(jnp.float32) - mean2 * s2

    pvec3 = _pack_rows([s1, t1, s2, t2, b1v,
                        params["b2"].astype(jnp.float32),
                        params["bn"].astype(jnp.float32)], Cvec)

    # ---- pass 2 (Pallas): fused norm1 -> conv1 -> norm2 -> conv2 + nin_shortcut ----
    # TODO(synk): temb path omitted — the reference's `[:, :, None, None]` broadcast is
    # shape-incompatible with a ConvTranspose1d (3-D) output, so only temb=None is reproducible.
    nlt3 = L // T3
    ntb3 = T3 // 8
    out = pl.pallas_call(
        _final_kernel,
        grid=(nlt3,),
        in_specs=[
            pl.BlockSpec((N, T3, Cin), lambda i: (0, i, 0)),
            pl.BlockSpec((N, 8, Cin), lambda i: (0, jnp.maximum(i * ntb3 - 1, 0), 0)),
            pl.BlockSpec((N, 8, Cin), lambda i: (0, jnp.minimum((i + 1) * ntb3, nlb - 1), 0)),
            pl.BlockSpec((8, Cvec), lambda i: (0, 0)),
            pl.BlockSpec((Cin, 3 * Cp), lambda i: (0, 0)),
            pl.BlockSpec((Cp, 3 * Cp), lambda i: (0, 0)),
            pl.BlockSpec((Cin, 3 * Cp), lambda i: (0, 0)),
        ],
        out_specs=pl.BlockSpec((N, T3, 2 * Cp), lambda i: (0, i, 0)),
        out_shape=jax.ShapeDtypeStruct((N, L, 2 * Cp), out_dtype),
        compiler_params=pltpu.CompilerParams(
            dimension_semantics=("parallel",), vmem_limit_bytes=vmem_lim),
    )(xb, xb, xb, pvec3, w1c, w2c, wnc)

    # free stride-2 interleave: (N, L, [even|odd]) -> (N, 2L, Cp); drop lane padding.
    out_nlc = out.reshape(N, 2 * L, Cp)[:, :, :Cout]
    if channels_last:
        return out_nlc
    return jnp.transpose(out_nlc, (0, 2, 1))


# ----------------------------- numpy reference (sanity check) ---------------------------
def _ref_conv_transpose1d(x, w, b, stride, pad, opad):
    N, Cin, L = x.shape
    _, Cout, K = w.shape
    Lout = (L - 1) * stride - 2 * pad + K + opad
    y = np.zeros((N, Cout, Lout), dtype=np.float64)
    for i in range(L):
        for k in range(K):
            lo = i * stride - pad + k
            if 0 <= lo < Lout:
                y[:, :, lo] += x[:, :, i] @ w[:, :, k]
    return y + b[None, :, None]


def _ref_bn(h, g, b):
    mean = h.mean(axis=(0, 2), keepdims=True)
    var = ((h - mean) ** 2).mean(axis=(0, 2), keepdims=True)
    return (h - mean) / np.sqrt(var + EPS) * g[None, :, None] + b[None, :, None]


def _ref_leaky(h):
    return np.where(h >= 0, h, NEG_SLOPE * h)


def _ref_forward(x, p):
    h = _ref_leaky(_ref_bn(x, p["g1"], p["be1"]))
    h = _ref_conv_transpose1d(h, p["w1"], p["b1"], 2, 1, 1)
    h = _ref_leaky(_ref_bn(h, p["g2"], p["be2"]))
    h = _ref_conv_transpose1d(h, p["w2"], p["b2"], 1, 1, 0)
    xs = _ref_conv_transpose1d(x, p["wn"], p["bn"], 2, 1, 1)
    return xs + h


# ----------------------------- main ------------------------------------------------------
if __name__ == "__main__":
    N, Cin, Cout, L = 2, 8, 16, 16           # small synthetic shapes

    key = jax.random.PRNGKey(0)
    ks = jax.random.split(key, 11)
    params = {
        # ConvTranspose1d weights in PyTorch layout (in_channels, out_channels, kernel=3)
        "w1": jax.random.normal(ks[0], (Cin, Cout, 3), jnp.float32) * 0.2,
        "b1": jax.random.normal(ks[1], (Cout,), jnp.float32) * 0.1,
        "w2": jax.random.normal(ks[2], (Cout, Cout, 3), jnp.float32) * 0.2,
        "b2": jax.random.normal(ks[3], (Cout,), jnp.float32) * 0.1,
        "wn": jax.random.normal(ks[4], (Cin, Cout, 3), jnp.float32) * 0.2,
        "bn": jax.random.normal(ks[5], (Cout,), jnp.float32) * 0.1,
        # BatchNorm affine params
        "g1": 1.0 + 0.1 * jax.random.normal(ks[6], (Cin,), jnp.float32),
        "be1": 0.1 * jax.random.normal(ks[7], (Cin,), jnp.float32),
        "g2": 1.0 + 0.1 * jax.random.normal(ks[8], (Cout,), jnp.float32),
        "be2": 0.1 * jax.random.normal(ks[9], (Cout,), jnp.float32),
    }
    x = jax.random.normal(ks[10], (N, Cin, L), jnp.float32)   # PyTorch NCL input

    # l_tile=8 / stats_l_tile=8 -> 2 L-tiles per pass: exercises the tiled grid, halo rows,
    # boundary masking and the 2-way parallel split of the stats pass.
    fwd = jax.jit(functools.partial(trans_resnet_block, l_tile=8, stats_l_tile=8))
    out = jax.block_until_ready(fwd(x, params))               # (N, Cout, 2L)

    # cross-check against a plain numpy implementation of the PyTorch forward.
    # tolerance sized for bf16 MXU operands / bf16 activation I/O (f32 accumulation).
    p_np = {k: np.asarray(v, np.float64) for k, v in params.items()}
    ref = _ref_forward(np.asarray(x, np.float64), p_np)
    np.testing.assert_allclose(np.asarray(out), ref, rtol=5e-2, atol=5e-2)

    print("KERNEL_OK")
</pallas_src>

<mosaic_0001>
module attributes {stable_mosaic.version = 11 : i64} {
  func.func @_conv1_stats_kernel(%arg0: i32, %arg1: i32, %arg2: memref<2x8x8xbf16, #tpu.memory_space<vmem>>, %arg3: memref<2x8x8xbf16, #tpu.memory_space<vmem>>, %arg4: memref<8x128xf32, #tpu.memory_space<vmem>>, %arg5: memref<8x384xbf16, #tpu.memory_space<vmem>>, %arg6: memref<1x2x128xf32, #tpu.memory_space<vmem>>) attributes {dimension_semantics = [#tpu.dimension_semantics<parallel>, #tpu.dimension_semantics<arbitrary>], iteration_bounds = array<i64: 2, 1>, scalar_prefetch = 0 : i64, scratch_operands = 0 : i64, tpu.core_type = #tpu.core_type<tc>, window_params = [{transform_indices = @transform_0, window_bounds = array<i64: 2, 8, 8>}, {transform_indices = @transform_1, window_bounds = array<i64: 2, 8, 8>}, {pipeline_mode = #tpu.pipeline_mode<synchronous>, transform_indices = @transform_2, window_bounds = array<i64: 8, 128>}, {pipeline_mode = #tpu.pipeline_mode<synchronous>, transform_indices = @transform_3, window_bounds = array<i64: 8, 384>}, {transform_indices = @transform_4, window_bounds = array<i64: 1, 2, 128>}]} {
    %c1_i32 = arith.constant 1 : i32
    %0 = arith.muli %arg0, %c1_i32 : i32
    %1 = arith.addi %0, %arg1 : i32
    %c1_i32_0 = arith.constant 1 : i32
    %2 = arith.cmpi eq, %1, %c1_i32_0 : i32
    %c0 = arith.constant 0 : index
    %c0_1 = arith.constant 0 : index
    %3 = vector.load %arg4[%c0, %c0_1] : memref<8x128xf32, #tpu.memory_space<vmem>>, vector<1x8xf32>
    %c1 = arith.constant 1 : index
    %c0_2 = arith.constant 0 : index
    %4 = vector.load %arg4[%c1, %c0_2] : memref<8x128xf32, #tpu.memory_space<vmem>>, vector<1x8xf32>
    %c0_3 = arith.constant 0 : index
    %c0_4 = arith.constant 0 : index
    %5 = vector.load %arg5[%c0_3, %c0_4] : memref<8x384xbf16, #tpu.memory_space<vmem>>, vector<8x384xbf16>
    %c0_5 = arith.constant 0 : index
    %c0_6 = arith.constant 0 : index
    %c0_7 = arith.constant 0 : index
    %6 = vector.load %arg2[%c0_5, %c0_6, %c0_7] : memref<2x8x8xbf16, #tpu.memory_space<vmem>>, vector<2x8x8xbf16>
    %7 = arith.extf %6 : vector<2x8x8xbf16> to vector<2x8x8xf32>
    %8 = vector.shape_cast %3 : vector<1x8xf32> to vector<1x1x8xf32>
    %9 = vector.broadcast %8 : vector<1x1x8xf32> to vector<2x8x8xf32>
    %10 = arith.mulf %7, %9 : vector<2x8x8xf32>
    %11 = vector.shape_cast %4 : vector<1x8xf32> to vector<1x1x8xf32>
    %12 = vector.broadcast %11 : vector<1x1x8xf32> to vector<2x8x8xf32>
    %13 = arith.addf %10, %12 : vector<2x8x8xf32>
    %cst = arith.constant 0.000000e+00 : f32
    %14 = vector.broadcast %cst : f32 to vector<2x8x8xf32>
    %15 = arith.cmpf oge, %13, %14 : vector<2x8x8xf32>
    %cst_8 = arith.constant 2.000000e-01 : f32
    %16 = vector.broadcast %cst_8 : f32 to vector<2x8x8xf32>
    %17 = arith.mulf %16, %13 : vector<2x8x8xf32>
    %18 = arith.select %15, %13, %17 : vector<2x8x8xi1>, vector<2x8x8xf32>
    %19 = vector.shape_cast %18 : vector<2x8x8xf32> to vector<16x8xf32>
    %20 = arith.truncf %19 : vector<16x8xf32> to vector<16x8xbf16>
    %cst_9 = arith.constant dense<0.000000e+00> : vector<16x384xf32>
    %21 = tpu.matmul %20, %5, %cst_9 {dimension_numbers = #tpu.dot_dimension_numbers<[1], [0], [0], [1], [0, 0, 1, 1], [], []>} : vector<16x8xbf16>, vector<8x384xbf16>, vector<16x384xf32> -> vector<16x384xf32>
    %22 = vector.shape_cast %21 : vector<16x384xf32> to vector<2x8x384xf32>
    %c0_10 = arith.constant 0 : index
    %c0_11 = arith.constant 0 : index
    %c0_12 = arith.constant 0 : index
    %23 = vector.load %arg3[%c0_10, %c0_11, %c0_12] : memref<2x8x8xbf16, #tpu.memory_space<vmem>>, vector<2x8x8xbf16>
    %24 = arith.extf %23 : vector<2x8x8xbf16> to vector<2x8x8xf32>
    %25 = vector.shape_cast %3 : vector<1x8xf32> to vector<1x1x8xf32>
    %26 = vector.broadcast %25 : vector<1x1x8xf32> to vector<2x8x8xf32>
    %27 = arith.mulf %24, %26 : vector<2x8x8xf32>
    %28 = vector.shape_cast %4 : vector<1x8xf32> to vector<1x1x8xf32>
    %29 = vector.broadcast %28 : vector<1x1x8xf32> to vector<2x8x8xf32>
    %30 = arith.addf %27, %29 : vector<2x8x8xf32>
    %cst_13 = arith.constant 0.000000e+00 : f32
    %31 = vector.broadcast %cst_13 : f32 to vector<2x8x8xf32>
    %32 = arith.cmpf oge, %30, %31 : vector<2x8x8xf32>
    %cst_14 = arith.constant 2.000000e-01 : f32
    %33 = vector.broadcast %cst_14 : f32 to vector<2x8x8xf32>
    %34 = arith.mulf %33, %30 : vector<2x8x8xf32>
    %35 = arith.select %32, %30, %34 : vector<2x8x8xi1>, vector<2x8x8xf32>
    %36 = vector.extract_strided_slice %5 {offsets = [0, 0], sizes = [8, 128], strides = [1, 1]} : vector<8x384xbf16> to vector<8x128xbf16>
    %37 = vector.shape_cast %35 : vector<2x8x8xf32> to vector<16x8xf32>
    %38 = arith.truncf %37 : vector<16x8xf32> to vector<16x8xbf16>
    %cst_15 = arith.constant dense<0.000000e+00> : vector<16x128xf32>
    %39 = tpu.matmul %38, %36, %cst_15 {dimension_numbers = #tpu.dot_dimension_numbers<[1], [0], [0], [1], [0, 0, 1, 1], [], []>} : vector<16x8xbf16>, vector<8x128xbf16>, vector<16x128xf32> -> vector<16x128xf32>
    %40 = vector.shape_cast %39 : vector<16x128xf32> to vector<2x8x128xf32>
    %41 = vector.extract_strided_slice %40 {offsets = [0, 0, 0], sizes = [2, 1, 128], strides = [1, 1, 1]} : vector<2x8x128xf32> to vector<2x1x128xf32>
    %cst_16 = arith.constant 0.000000e+00 : f32
    %42 = vector.broadcast %cst_16 : f32 to vector<2x1x128xf32>
    %43 = arith.select %2, %42, %41 : vector<2x1x128xf32>
    %44 = vector.extract_strided_slice %22 {offsets = [0, 0, 128], sizes = [2, 8, 128], strides = [1, 1, 1]} : vector<2x8x384xf32> to vector<2x8x128xf32>
    %45 = vector.extract_strided_slice %22 {offsets = [0, 0, 256], sizes = [2, 8, 128], strides = [1, 1, 1]} : vector<2x8x384xf32> to vector<2x8x128xf32>
    %46 = vector.extract_strided_slice %22 {offsets = [0, 0, 0], sizes = [2, 8, 128], strides = [1, 1, 1]} : vector<2x8x384xf32> to vector<2x8x128xf32>
    %47 = vector.extract_strided_slice %46 {offsets = [0, 1, 0], sizes = [2, 7, 128], strides = [1, 1, 1]} : vector<2x8x128xf32> to vector<2x7x128xf32>
    %48 = tpu.concatenate %47, %43 in 1 : vector<2x7x128xf32>, vector<2x1x128xf32> -> vector<2x8x128xf32>
    %49 = arith.addf %45, %48 : vector<2x8x128xf32>
    %cst_17 = arith.constant dense<0.000000e+00> : vector<128xf32>
    %50 = vector.multi_reduction <add>, %44, %cst_17 [0, 1] : vector<2x8x128xf32> to vector<128xf32>
    %51 = vector.shape_cast %50 : vector<128xf32> to vector<1x1x128xf32>
    %52 = vector.shape_cast %51 : vector<1x1x128xf32> to vector<1x128xf32>
    %cst_18 = arith.constant dense<0.000000e+00> : vector<128xf32>
    %53 = vector.multi_reduction <add>, %49, %cst_18 [0, 1] : vector<2x8x128xf32> to vector<128xf32>
    %54 = vector.shape_cast %53 : vector<128xf32> to vector<1x1x128xf32>
    %55 = vector.shape_cast %54 : vector<1x1x128xf32> to vector<1x128xf32>
    %56 = arith.addf %52, %55 : vector<1x128xf32>
    %57 = arith.mulf %44, %44 : vector<2x8x128xf32>
    %cst_19 = arith.constant dense<0.000000e+00> : vector<128xf32>
    %58 = vector.multi_reduction <add>, %57, %cst_19 [0, 1] : vector<2x8x128xf32> to vector<128xf32>
    %59 = vector.shape_cast %58 : vector<128xf32> to vector<1x1x128xf32>
    %60 = vector.shape_cast %59 : vector<1x1x128xf32> to vector<1x128xf32>
    %61 = arith.mulf %49, %49 : vector<2x8x128xf32>
    %cst_20 = arith.constant dense<0.000000e+00> : vector<128xf32>
    %62 = vector.multi_reduction <add>, %61, %cst_20 [0, 1] : vector<2x8x128xf32> to vector<128xf32>
    %63 = vector.shape_cast %62 : vector<128xf32> to vector<1x1x128xf32>
    %64 = vector.shape_cast %63 : vector<1x1x128xf32> to vector<1x128xf32>
    %65 = arith.addf %60, %64 : vector<1x128xf32>
    %c0_i32 = arith.constant 0 : i32
    %66 = arith.cmpi eq, %arg1, %c0_i32 : i32
    %67 = arith.extui %66 : i1 to i32
    %c0_i32_21 = arith.constant 0 : i32
    %68 = arith.cmpi ne, %67, %c0_i32_21 : i32
    scf.if %68 {
      %cst_28 = arith.constant 0.000000e+00 : f32
      %74 = vector.broadcast %cst_28 : f32 to vector<1x2x128xf32>
      %c0_29 = arith.constant 0 : index
      %c0_30 = arith.constant 0 : index
      %c0_31 = arith.constant 0 : index
      %75 = vector.load %arg6[%c0_29, %c0_30, %c0_31] : memref<1x2x128xf32, #tpu.memory_space<vmem>>, vector<1x2x128xf32>
      tpu.vector_store %arg6[%c0_29, %c0_30, %c0_31], %74 {strides = array<i32>} : memref<1x2x128xf32, #tpu.memory_space<vmem>>, vector<1x2x128xf32>,
    } else {
    }
    %c0_22 = arith.constant 0 : index
    %c0_23 = arith.constant 0 : index
    %c0_24 = arith.constant 0 : index
    %69 = vector.load %arg6[%c0_22, %c0_23, %c0_24] : memref<1x2x128xf32, #tpu.memory_space<vmem>>, vector<1x2x128xf32>
    %70 = tpu.concatenate %56, %65 in 0 : vector<1x128xf32>, vector<1x128xf32> -> vector<2x128xf32>
    %71 = vector.shape_cast %70 : vector<2x128xf32> to vector<1x2x128xf32>
    %72 = arith.addf %69, %71 : vector<1x2x128xf32>
    %c0_25 = arith.constant 0 : index
    %c0_26 = arith.constant 0 : index
    %c0_27 = arith.constant 0 : index
    %73 = vector.load %arg6[%c0_25, %c0_26, %c0_27] : memref<1x2x128xf32, #tpu.memory_space<vmem>>, vector<1x2x128xf32>
    tpu.vector_store %arg6[%c0_25, %c0_26, %c0_27], %72 {strides = array<i32>} : memref<1x2x128xf32, #tpu.memory_space<vmem>>, vector<1x2x128xf32>,
    return
  }
  func.func @transform_0(%arg0: i32, %arg1: i32) -> (i32, i32, i32) {
    %c1_i32 = arith.constant 1 : i32
    %0 = arith.muli %arg0, %c1_i32 : i32
    %1 = arith.addi %0, %arg1 : i32
    %c0_i32 = arith.constant 0 : i32
    %c0_i32_0 = arith.constant 0 : i32
    %c0_i32_1 = arith.constant 0 : i32
    return %c0_i32, %1, %c0_i32_0 : i32, i32, i32
  }
  func.func @transform_1(%arg0: i32, %arg1: i32) -> (i32, i32, i32) {
    %c1_i32 = arith.constant 1 : i32
    %0 = arith.muli %arg0, %c1_i32 : i32
    %1 = arith.addi %0, %arg1 : i32
    %c1_i32_0 = arith.constant 1 : i32
    %2 = arith.addi %1, %c1_i32_0 : i32
    %c1_i32_1 = arith.constant 1 : i32
    %3 = arith.muli %2, %c1_i32_1 : i32
    %c1_i32_2 = arith.constant 1 : i32
    %4 = arith.minsi %3, %c1_i32_2 : i32
    %c0_i32 = arith.constant 0 : i32
    %c0_i32_3 = arith.constant 0 : i32
    %c0_i32_4 = arith.constant 0 : i32
    return %c0_i32, %4, %c0_i32_3 : i32, i32, i32
  }
  func.func @transform_2(%arg0: i32, %arg1: i32) -> (i32, i32) {
    %c0_i32 = arith.constant 0 : i32
    %c0_i32_0 = arith.constant 0 : i32
    %c0_i32_1 = arith.constant 0 : i32
    return %c0_i32, %c0_i32_0 : i32, i32
  }
  func.func @transform_3(%arg0: i32, %arg1: i32) -> (i32, i32) {
    %c0_i32 = arith.constant 0 : i32
    %c0_i32_0 = arith.constant 0 : i32
    %c0_i32_1 = arith.constant 0 : i32
    return %c0_i32, %c0_i32_0 : i32, i32
  }
  func.func @transform_4(%arg0: i32, %arg1: i32) -> (i32, i32, i32) {
    %c0_i32 = arith.constant 0 : i32
    %c0_i32_0 = arith.constant 0 : i32
    %c0_i32_1 = arith.constant 0 : i32
    return %arg0, %c0_i32, %c0_i32_0 : i32, i32, i32
  }
}

module attributes {stable_mosaic.version = 11 : i64} {
  func.func @_final_kernel(%arg0: i32, %arg1: memref<2x8x8xbf16, #tpu.memory_space<vmem>>, %arg2: memref<2x8x8xbf16, #tpu.memory_space<vmem>>, %arg3: memref<2x8x8xbf16, #tpu.memory_space<vmem>>, %arg4: memref<8x128xf32, #tpu.memory_space<vmem>>, %arg5: memref<8x384xbf16, #tpu.memory_space<vmem>>, %arg6: memref<128x384xbf16, #tpu.memory_space<vmem>>, %arg7: memref<8x384xbf16, #tpu.memory_space<vmem>>, %arg8: memref<2x8x256xf32, #tpu.memory_space<vmem>>) attributes {dimension_semantics = [#tpu.dimension_semantics<parallel>], iteration_bounds = array<i64: 2>, scalar_prefetch = 0 : i64, scratch_operands = 0 : i64, tpu.core_type = #tpu.core_type<tc>, window_params = [{transform_indices = @transform_0, window_bounds = array<i64: 2, 8, 8>}, {transform_indices = @transform_1, window_bounds = array<i64: 2, 8, 8>}, {transform_indices = @transform_2, window_bounds = array<i64: 2, 8, 8>}, {pipeline_mode = #tpu.pipeline_mode<synchronous>, transform_indices = @transform_3, window_bounds = array<i64: 8, 128>}, {pipeline_mode = #tpu.pipeline_mode<synchronous>, transform_indices = @transform_4, window_bounds = array<i64: 8, 384>}, {pipeline_mode = #tpu.pipeline_mode<synchronous>, transform_indices = @transform_5, window_bounds = array<i64: 128, 384>}, {pipeline_mode = #tpu.pipeline_mode<synchronous>, transform_indices = @transform_6, window_bounds = array<i64: 8, 384>}, {transform_indices = @transform_7, window_bounds = array<i64: 2, 8, 256>}]} {
    %c0_i32 = arith.constant 0 : i32
    %0 = arith.cmpi eq, %arg0, %c0_i32 : i32
    %c1_i32 = arith.constant 1 : i32
    %1 = arith.cmpi eq, %arg0, %c1_i32 : i32
    %c0 = arith.constant 0 : index
    %c0_0 = arith.constant 0 : index
    %2 = vector.load %arg4[%c0, %c0_0] : memref<8x128xf32, #tpu.memory_space<vmem>>, vector<1x8xf32>
    %c1 = arith.constant 1 : index
    %c0_1 = arith.constant 0 : index
    %3 = vector.load %arg4[%c1, %c0_1] : memref<8x128xf32, #tpu.memory_space<vmem>>, vector<1x8xf32>
    %c2 = arith.constant 2 : index
    %c0_2 = arith.constant 0 : index
    %4 = vector.load %arg4[%c2, %c0_2] : memref<8x128xf32, #tpu.memory_space<vmem>>, vector<1x128xf32>
    %c3 = arith.constant 3 : index
    %c0_3 = arith.constant 0 : index
    %5 = vector.load %arg4[%c3, %c0_3] : memref<8x128xf32, #tpu.memory_space<vmem>>, vector<1x128xf32>
    %c4 = arith.constant 4 : index
    %c0_4 = arith.constant 0 : index
    %6 = vector.load %arg4[%c4, %c0_4] : memref<8x128xf32, #tpu.memory_space<vmem>>, vector<1x128xf32>
    %c5 = arith.constant 5 : index
    %c0_5 = arith.constant 0 : index
    %7 = vector.load %arg4[%c5, %c0_5] : memref<8x128xf32, #tpu.memory_space<vmem>>, vector<1x128xf32>
    %c6 = arith.constant 6 : index
    %c0_6 = arith.constant 0 : index
    %8 = vector.load %arg4[%c6, %c0_6] : memref<8x128xf32, #tpu.memory_space<vmem>>, vector<1x128xf32>
    %c0_7 = arith.constant 0 : index
    %c0_8 = arith.constant 0 : index
    %9 = vector.load %arg5[%c0_7, %c0_8] : memref<8x384xbf16, #tpu.memory_space<vmem>>, vector<8x384xbf16>
    %c0_9 = arith.constant 0 : index
    %c0_10 = arith.constant 0 : index
    %10 = vector.load %arg6[%c0_9, %c0_10] : memref<128x384xbf16, #tpu.memory_space<vmem>>, vector<128x384xbf16>
    %c0_11 = arith.constant 0 : index
    %c0_12 = arith.constant 0 : index
    %11 = vector.load %arg7[%c0_11, %c0_12] : memref<8x384xbf16, #tpu.memory_space<vmem>>, vector<8x384xbf16>
    %c0_13 = arith.constant 0 : index
    %c0_14 = arith.constant 0 : index
    %c0_15 = arith.constant 0 : index
    %12 = vector.load %arg1[%c0_13, %c0_14, %c0_15] : memref<2x8x8xbf16, #tpu.memory_space<vmem>>, vector<2x8x8xbf16>
    %13 = arith.extf %12 : vector<2x8x8xbf16> to vector<2x8x8xf32>
    %c0_16 = arith.constant 0 : index
    %c0_17 = arith.constant 0 : index
    %c0_18 = arith.constant 0 : index
    %14 = vector.load %arg2[%c0_16, %c0_17, %c0_18] : memref<2x8x8xbf16, #tpu.memory_space<vmem>>, vector<2x8x8xbf16>
    %15 = arith.extf %14 : vector<2x8x8xbf16> to vector<2x8x8xf32>
    %c0_19 = arith.constant 0 : index
    %c0_20 = arith.constant 0 : index
    %c0_21 = arith.constant 0 : index
    %16 = vector.load %arg3[%c0_19, %c0_20, %c0_21] : memref<2x8x8xbf16, #tpu.memory_space<vmem>>, vector<2x8x8xbf16>
    %17 = arith.extf %16 : vector<2x8x8xbf16> to vector<2x8x8xf32>
    %18 = vector.shape_cast %13 : vector<2x8x8xf32> to vector<16x8xf32>
    %19 = arith.truncf %18 : vector<16x8xf32> to vector<16x8xbf16>
    %cst = arith.constant dense<0.000000e+00> : vector<16x384xf32>
    %20 = tpu.matmul %19, %11, %cst {dimension_numbers = #tpu.dot_dimension_numbers<[1], [0], [0], [1], [0, 0, 1, 1], [], []>} : vector<16x8xbf16>, vector<8x384xbf16>, vector<16x384xf32> -> vector<16x384xf32>
    %21 = vector.shape_cast %20 : vector<16x384xf32> to vector<2x8x384xf32>
    %22 = vector.extract_strided_slice %11 {offsets = [0, 0], sizes = [8, 128], strides = [1, 1]} : vector<8x384xbf16> to vector<8x128xbf16>
    %23 = vector.shape_cast %17 : vector<2x8x8xf32> to vector<16x8xf32>
    %24 = arith.truncf %23 : vector<16x8xf32> to vector<16x8xbf16>
    %cst_22 = arith.constant dense<0.000000e+00> : vector<16x128xf32>
    %25 = tpu.matmul %24, %22, %cst_22 {dimension_numbers = #tpu.dot_dimension_numbers<[1], [0], [0], [1], [0, 0, 1, 1], [], []>} : vector<16x8xbf16>, vector<8x128xbf16>, vector<16x128xf32> -> vector<16x128xf32>
    %26 = vector.shape_cast %25 : vector<16x128xf32> to vector<2x8x128xf32>
    %27 = vector.extract_strided_slice %26 {offsets = [0, 0, 0], sizes = [2, 1, 128], strides = [1, 1, 1]} : vector<2x8x128xf32> to vector<2x1x128xf32>
    %cst_23 = arith.constant 0.000000e+00 : f32
    %28 = vector.broadcast %cst_23 : f32 to vector<2x1x128xf32>
    %29 = arith.select %1, %28, %27 : vector<2x1x128xf32>
    %30 = vector.shape_cast %2 : vector<1x8xf32> to vector<1x1x8xf32>
    %31 = vector.broadcast %30 : vector<1x1x8xf32> to vector<2x8x8xf32>
    %32 = arith.mulf %13, %31 : vector<2x8x8xf32>
    %33 = vector.shape_cast %3 : vector<1x8xf32> to vector<1x1x8xf32>
    %34 = vector.broadcast %33 : vector<1x1x8xf32> to vector<2x8x8xf32>
    %35 = arith.addf %32, %34 : vector<2x8x8xf32>
    %cst_24 = arith.constant 0.000000e+00 : f32
    %36 = vector.broadcast %cst_24 : f32 to vector<2x8x8xf32>
    %37 = arith.cmpf oge, %35, %36 : vector<2x8x8xf32>
    %cst_25 = arith.constant 2.000000e-01 : f32
    %38 = vector.broadcast %cst_25 : f32 to vector<2x8x8xf32>
    %39 = arith.mulf %38, %35 : vector<2x8x8xf32>
    %40 = arith.select %37, %35, %39 : vector<2x8x8xi1>, vector<2x8x8xf32>
    %41 = vector.shape_cast %40 : vector<2x8x8xf32> to vector<16x8xf32>
    %42 = arith.truncf %41 : vector<16x8xf32> to vector<16x8xbf16>
    %cst_26 = arith.constant dense<0.000000e+00> : vector<16x384xf32>
    %43 = tpu.matmul %42, %9, %cst_26 {dimension_numbers = #tpu.dot_dimension_numbers<[1], [0], [0], [1], [0, 0, 1, 1], [], []>} : vector<16x8xbf16>, vector<8x384xbf16>, vector<16x384xf32> -> vector<16x384xf32>
    %44 = vector.shape_cast %43 : vector<16x384xf32> to vector<2x8x384xf32>
    %45 = tpu.concatenate %15, %17 in 1 : vector<2x8x8xf32>, vector<2x8x8xf32> -> vector<2x16x8xf32>
    %46 = vector.shape_cast %2 : vector<1x8xf32> to vector<1x1x8xf32>
    %47 = vector.broadcast %46 : vector<1x1x8xf32> to vector<2x16x8xf32>
    %48 = arith.mulf %45, %47 : vector<2x16x8xf32>
    %49 = vector.shape_cast %3 : vector<1x8xf32> to vector<1x1x8xf32>
    %50 = vector.broadcast %49 : vector<1x1x8xf32> to vector<2x16x8xf32>
    %51 = arith.addf %48, %50 : vector<2x16x8xf32>
    %cst_27 = arith.constant 0.000000e+00 : f32
    %52 = vector.broadcast %cst_27 : f32 to vector<2x16x8xf32>
    %53 = arith.cmpf oge, %51, %52 : vector<2x16x8xf32>
    %cst_28 = arith.constant 2.000000e-01 : f32
    %54 = vector.broadcast %cst_28 : f32 to vector<2x16x8xf32>
    %55 = arith.mulf %54, %51 : vector<2x16x8xf32>
    %56 = arith.select %53, %51, %55 : vector<2x16x8xi1>, vector<2x16x8xf32>
    %57 = vector.shape_cast %56 : vector<2x16x8xf32> to vector<32x8xf32>
    %58 = arith.truncf %57 : vector<32x8xf32> to vector<32x8xbf16>
    %cst_29 = arith.constant dense<0.000000e+00> : vector<32x384xf32>
    %59 = tpu.matmul %58, %9, %cst_29 {dimension_numbers = #tpu.dot_dimension_numbers<[1], [0], [0], [1], [0, 0, 1, 1], [], []>} : vector<32x8xbf16>, vector<8x384xbf16>, vector<32x384xf32> -> vector<32x384xf32>
    %60 = vector.shape_cast %59 : vector<32x384xf32> to vector<2x16x384xf32>
    %61 = vector.extract_strided_slice %60 {offsets = [0, 7, 0], sizes = [2, 1, 384], strides = [1, 1, 1]} : vector<2x16x384xf32> to vector<2x1x384xf32>
    %62 = vector.extract_strided_slice %60 {offsets = [0, 8, 0], sizes = [2, 1, 384], strides = [1, 1, 1]} : vector<2x16x384xf32> to vector<2x1x384xf32>
    %cst_30 = arith.constant 0.000000e+00 : f32
    %63 = vector.broadcast %cst_30 : f32 to vector<2x1x384xf32>
    %64 = arith.select %1, %63, %62 : vector<2x1x384xf32>
    %65 = vector.extract_strided_slice %44 {offsets = [0, 0, 128], sizes = [2, 8, 128], strides = [1, 1, 1]} : vector<2x8x384xf32> to vector<2x8x128xf32>
    %66 = vector.shape_cast %6 : vector<1x128xf32> to vector<1x1x128xf32>
    %67 = vector.broadcast %66 : vector<1x1x128xf32> to vector<2x8x128xf32>
    %68 = arith.addf %65, %67 : vector<2x8x128xf32>
    %69 = vector.extract_strided_slice %44 {offsets = [0, 0, 256], sizes = [2, 8, 128], strides = [1, 1, 1]} : vector<2x8x384xf32> to vector<2x8x128xf32>
    %70 = vector.extract_strided_slice %44 {offsets = [0, 0, 0], sizes = [2, 8, 128], strides = [1, 1, 1]} : vector<2x8x384xf32> to vector<2x8x128xf32>
    %71 = vector.extract_strided_slice %64 {offsets = [0, 0, 0], sizes = [2, 1, 128], strides = [1, 1, 1]} : vector<2x1x384xf32> to vector<2x1x128xf32>
    %72 = vector.extract_strided_slice %70 {offsets = [0, 1, 0], sizes = [2, 7, 128], strides = [1, 1, 1]} : vector<2x8x128xf32> to vector<2x7x128xf32>
    %73 = tpu.concatenate %72, %71 in 1 : vector<2x7x128xf32>, vector<2x1x128xf32> -> vector<2x8x128xf32>
    %74 = arith.addf %69, %73 : vector<2x8x128xf32>
    %75 = vector.shape_cast %6 : vector<1x128xf32> to vector<1x1x128xf32>
    %76 = vector.broadcast %75 : vector<1x1x128xf32> to vector<2x8x128xf32>
    %77 = arith.addf %74, %76 : vector<2x8x128xf32>
    %78 = vector.shape_cast %4 : vector<1x128xf32> to vector<1x1x128xf32>
    %79 = vector.broadcast %78 : vector<1x1x128xf32> to vector<2x8x128xf32>
    %80 = arith.mulf %68, %79 : vector<2x8x128xf32>
    %81 = vector.shape_cast %5 : vector<1x128xf32> to vector<1x1x128xf32>
    %82 = vector.broadcast %81 : vector<1x1x128xf32> to vector<2x8x128xf32>
    %83 = arith.addf %80, %82 : vector<2x8x128xf32>
    %cst_31 = arith.constant 0.000000e+00 : f32
    %84 = vector.broadcast %cst_31 : f32 to vector<2x8x128xf32>
    %85 = arith.cmpf oge, %83, %84 : vector<2x8x128xf32>
    %cst_32 = arith.constant 2.000000e-01 : f32
    %86 = vector.broadcast %cst_32 : f32 to vector<2x8x128xf32>
    %87 = arith.mulf %86, %83 : vector<2x8x128xf32>
    %88 = arith.select %85, %83, %87 : vector<2x8x128xi1>, vector<2x8x128xf32>
    %89 = vector.shape_cast %4 : vector<1x128xf32> to vector<1x1x128xf32>
    %90 = vector.broadcast %89 : vector<1x1x128xf32> to vector<2x8x128xf32>
    %91 = arith.mulf %77, %90 : vector<2x8x128xf32>
    %92 = vector.shape_cast %5 : vector<1x128xf32> to vector<1x1x128xf32>
    %93 = vector.broadcast %92 : vector<1x1x128xf32> to vector<2x8x128xf32>
    %94 = arith.addf %91, %93 : vector<2x8x128xf32>
    %cst_33 = arith.constant 0.000000e+00 : f32
    %95 = vector.broadcast %cst_33 : f32 to vector<2x8x128xf32>
    %96 = arith.cmpf oge, %94, %95 : vector<2x8x128xf32>
    %cst_34 = arith.constant 2.000000e-01 : f32
    %97 = vector.broadcast %cst_34 : f32 to vector<2x8x128xf32>
    %98 = arith.mulf %97, %94 : vector<2x8x128xf32>
    %99 = arith.select %96, %94, %98 : vector<2x8x128xi1>, vector<2x8x128xf32>
    %100 = vector.extract_strided_slice %61 {offsets = [0, 0, 256], sizes = [2, 1, 128], strides = [1, 1, 1]} : vector<2x1x384xf32> to vector<2x1x128xf32>
    %101 = vector.extract_strided_slice %44 {offsets = [0, 0, 0], sizes = [2, 1, 128], strides = [1, 1, 1]} : vector<2x8x384xf32> to vector<2x1x128xf32>
    %102 = arith.addf %100, %101 : vector<2x1x128xf32>
    %103 = vector.shape_cast %6 : vector<1x128xf32> to vector<1x1x128xf32>
    %104 = vector.broadcast %103 : vector<1x1x128xf32> to vector<2x1x128xf32>
    %105 = arith.addf %102, %104 : vector<2x1x128xf32>
    %106 = vector.shape_cast %4 : vector<1x128xf32> to vector<1x1x128xf32>
    %107 = vector.broadcast %106 : vector<1x1x128xf32> to vector<2x1x128xf32>
    %108 = arith.mulf %105, %107 : vector<2x1x128xf32>
    %109 = vector.shape_cast %5 : vector<1x128xf32> to vector<1x1x128xf32>
    %110 = vector.broadcast %109 : vector<1x1x128xf32> to vector<2x1x128xf32>
    %111 = arith.addf %108, %110 : vector<2x1x128xf32>
    %cst_35 = arith.constant 0.000000e+00 : f32
    %112 = vector.broadcast %cst_35 : f32 to vector<2x1x128xf32>
    %113 = arith.cmpf oge, %111, %112 : vector<2x1x128xf32>
    %cst_36 = arith.constant 2.000000e-01 : f32
    %114 = vector.broadcast %cst_36 : f32 to vector<2x1x128xf32>
    %115 = arith.mulf %114, %111 : vector<2x1x128xf32>
    %116 = arith.select %113, %111, %115 : vector<2x1x128xi1>, vector<2x1x128xf32>
    %cst_37 = arith.constant 0.000000e+00 : f32
    %117 = vector.broadcast %cst_37 : f32 to vector<2x1x128xf32>
    %118 = arith.select %0, %117, %116 : vector<2x1x128xf32>
    %119 = vector.extract_strided_slice %64 {offsets = [0, 0, 128], sizes = [2, 1, 128], strides = [1, 1, 1]} : vector<2x1x384xf32> to vector<2x1x128xf32>
    %120 = vector.shape_cast %6 : vector<1x128xf32> to vector<1x1x128xf32>
    %121 = vector.broadcast %120 : vector<1x1x128xf32> to vector<2x1x128xf32>
    %122 = arith.addf %119, %121 : vector<2x1x128xf32>
    %123 = vector.shape_cast %4 : vector<1x128xf32> to vector<1x1x128xf32>
    %124 = vector.broadcast %123 : vector<1x1x128xf32> to vector<2x1x128xf32>
    %125 = arith.mulf %122, %124 : vector<2x1x128xf32>
    %126 = vector.shape_cast %5 : vector<1x128xf32> to vector<1x1x128xf32>
    %127 = vector.broadcast %126 : vector<1x1x128xf32> to vector<2x1x128xf32>
    %128 = arith.addf %125, %127 : vector<2x1x128xf32>
    %cst_38 = arith.constant 0.000000e+00 : f32
    %129 = vector.broadcast %cst_38 : f32 to vector<2x1x128xf32>
    %130 = arith.cmpf oge, %128, %129 : vector<2x1x128xf32>
    %cst_39 = arith.constant 2.000000e-01 : f32
    %131 = vector.broadcast %cst_39 : f32 to vector<2x1x128xf32>
    %132 = arith.mulf %131, %128 : vector<2x1x128xf32>
    %133 = arith.select %130, %128, %132 : vector<2x1x128xi1>, vector<2x1x128xf32>
    %cst_40 = arith.constant 0.000000e+00 : f32
    %134 = vector.broadcast %cst_40 : f32 to vector<2x1x128xf32>
    %135 = arith.select %1, %134, %133 : vector<2x1x128xf32>
    %cst_41 = arith.constant 0.000000e+00 : f32
    %136 = vector.broadcast %cst_41 : f32 to vector<2x6x128xf32>
    %137 = tpu.concatenate %88, %99, %118, %135, %136 in 1 : vector<2x8x128xf32>, vector<2x8x128xf32>, vector<2x1x128xf32>, vector<2x1x128xf32>, vector<2x6x128xf32> -> vector<2x24x128xf32>
    %138 = vector.shape_cast %137 : vector<2x24x128xf32> to vector<48x128xf32>
    %139 = arith.truncf %138 : vector<48x128xf32> to vector<48x128xbf16>
    %cst_42 = arith.constant dense<0.000000e+00> : vector<48x384xf32>
    %140 = tpu.matmul %139, %10, %cst_42 {dimension_numbers = #tpu.dot_dimension_numbers<[1], [0], [0], [1], [0, 0, 1, 1], [], []>} : vector<48x128xbf16>, vector<128x384xbf16>, vector<48x384xf32> -> vector<48x384xf32>
    %141 = vector.shape_cast %140 : vector<48x384xf32> to vector<2x24x384xf32>
    %142 = vector.extract_strided_slice %141 {offsets = [0, 0, 0], sizes = [2, 8, 384], strides = [1, 1, 1]} : vector<2x24x384xf32> to vector<2x8x384xf32>
    %143 = vector.extract_strided_slice %141 {offsets = [0, 8, 0], sizes = [2, 8, 384], strides = [1, 1, 1]} : vector<2x24x384xf32> to vector<2x8x384xf32>
    %144 = vector.extract_strided_slice %141 {offsets = [0, 16, 256], sizes = [2, 1, 128], strides = [1, 1, 1]} : vector<2x24x384xf32> to vector<2x1x128xf32>
    %145 = vector.extract_strided_slice %141 {offsets = [0, 17, 0], sizes = [2, 1, 128], strides = [1, 1, 1]} : vector<2x24x384xf32> to vector<2x1x128xf32>
    %146 = vector.extract_strided_slice %21 {offsets = [0, 0, 128], sizes = [2, 8, 128], strides = [1, 1, 1]} : vector<2x8x384xf32> to vector<2x8x128xf32>
    %147 = vector.shape_cast %8 : vector<1x128xf32> to vector<1x1x128xf32>
    %148 = vector.broadcast %147 : vector<1x1x128xf32> to vector<2x8x128xf32>
    %149 = arith.addf %146, %148 : vector<2x8x128xf32>
    %150 = vector.shape_cast %7 : vector<1x128xf32> to vector<1x1x128xf32>
    %151 = vector.broadcast %150 : vector<1x1x128xf32> to vector<2x8x128xf32>
    %152 = arith.addf %149, %151 : vector<2x8x128xf32>
    %153 = vector.extract_strided_slice %143 {offsets = [0, 0, 0], sizes = [2, 8, 128], strides = [1, 1, 1]} : vector<2x8x384xf32> to vector<2x8x128xf32>
    %154 = arith.addf %152, %153 : vector<2x8x128xf32>
    %155 = vector.extract_strided_slice %142 {offsets = [0, 0, 128], sizes = [2, 8, 128], strides = [1, 1, 1]} : vector<2x8x384xf32> to vector<2x8x128xf32>
    %156 = arith.addf %154, %155 : vector<2x8x128xf32>
    %157 = vector.extract_strided_slice %143 {offsets = [0, 0, 256], sizes = [2, 8, 128], strides = [1, 1, 1]} : vector<2x8x384xf32> to vector<2x8x128xf32>
    %158 = vector.extract_strided_slice %157 {offsets = [0, 0, 0], sizes = [2, 7, 128], strides = [1, 1, 1]} : vector<2x8x128xf32> to vector<2x7x128xf32>
    %159 = tpu.concatenate %144, %158 in 1 : vector<2x1x128xf32>, vector<2x7x128xf32> -> vector<2x8x128xf32>
    %160 = arith.addf %156, %159 : vector<2x8x128xf32>
    %161 = vector.extract_strided_slice %21 {offsets = [0, 0, 256], sizes = [2, 8, 128], strides = [1, 1, 1]} : vector<2x8x384xf32> to vector<2x8x128xf32>
    %162 = vector.shape_cast %8 : vector<1x128xf32> to vector<1x1x128xf32>
    %163 = vector.broadcast %162 : vector<1x1x128xf32> to vector<2x8x128xf32>
    %164 = arith.addf %161, %163 : vector<2x8x128xf32>
    %165 = vector.shape_cast %7 : vector<1x128xf32> to vector<1x1x128xf32>
    %166 = vector.broadcast %165 : vector<1x1x128xf32> to vector<2x8x128xf32>
    %167 = arith.addf %164, %166 : vector<2x8x128xf32>
    %168 = vector.extract_strided_slice %143 {offsets = [0, 0, 128], sizes = [2, 8, 128], strides = [1, 1, 1]} : vector<2x8x384xf32> to vector<2x8x128xf32>
    %169 = arith.addf %167, %168 : vector<2x8x128xf32>
    %170 = vector.extract_strided_slice %142 {offsets = [0, 0, 256], sizes = [2, 8, 128], strides = [1, 1, 1]} : vector<2x8x384xf32> to vector<2x8x128xf32>
    %171 = arith.addf %169, %170 : vector<2x8x128xf32>
    %172 = vector.extract_strided_slice %21 {offsets = [0, 0, 0], sizes = [2, 8, 128], strides = [1, 1, 1]} : vector<2x8x384xf32> to vector<2x8x128xf32>
    %173 = vector.extract_strided_slice %142 {offsets = [0, 0, 0], sizes = [2, 8, 128], strides = [1, 1, 1]} : vector<2x8x384xf32> to vector<2x8x128xf32>
    %174 = arith.addf %172, %173 : vector<2x8x128xf32>
    %175 = arith.addf %29, %145 : vector<2x1x128xf32>
    %176 = vector.extract_strided_slice %174 {offsets = [0, 1, 0], sizes = [2, 7, 128], strides = [1, 1, 1]} : vector<2x8x128xf32> to vector<2x7x128xf32>
    %177 = tpu.concatenate %176, %175 in 1 : vector<2x7x128xf32>, vector<2x1x128xf32> -> vector<2x8x128xf32>
    %178 = arith.addf %171, %177 : vector<2x8x128xf32>
    %179 = tpu.concatenate %160, %178 in 2 : vector<2x8x128xf32>, vector<2x8x128xf32> -> vector<2x8x256xf32>
    %c0_43 = arith.constant 0 : index
    %c0_44 = arith.constant 0 : index
    %c0_45 = arith.constant 0 : index
    %180 = vector.load %arg8[%c0_43, %c0_44, %c0_45] : memref<2x8x256xf32, #tpu.memory_space<vmem>>, vector<2x8x256xf32>
    tpu.vector_store %arg8[%c0_43, %c0_44, %c0_45], %179 {strides = array<i32>} : memref<2x8x256xf32, #tpu.memory_space<vmem>>, vector<2x8x256xf32>,
    return
  }
  func.func @transform_0(%arg0: i32) -> (i32, i32, i32) {
    %c0_i32 = arith.constant 0 : i32
    %c0_i32_0 = arith.constant 0 : i32
    %c0_i32_1 = arith.constant 0 : i32
    return %c0_i32, %arg0, %c0_i32_0 : i32, i32, i32
  }
  func.func @transform_1(%arg0: i32) -> (i32, i32, i32) {
    %c1_i32 = arith.constant 1 : i32
    %0 = arith.muli %arg0, %c1_i32 : i32
    %c1_i32_0 = arith.constant 1 : i32
    %1 = arith.subi %0, %c1_i32_0 : i32
    %c0_i32 = arith.constant 0 : i32
    %2 = arith.maxsi %1, %c0_i32 : i32
    %c0_i32_1 = arith.constant 0 : i32
    %c0_i32_2 = arith.constant 0 : i32
    %c0_i32_3 = arith.constant 0 : i32
    return %c0_i32_1, %2, %c0_i32_2 : i32, i32, i32
  }
  func.func @transform_2(%arg0: i32) -> (i32, i32, i32) {
    %c1_i32 = arith.constant 1 : i32
    %0 = arith.addi %arg0, %c1_i32 : i32
    %c1_i32_0 = arith.constant 1 : i32
    %1 = arith.muli %0, %c1_i32_0 : i32
    %c1_i32_1 = arith.constant 1 : i32
    %2 = arith.minsi %1, %c1_i32_1 : i32
    %c0_i32 = arith.constant 0 : i32
    %c0_i32_2 = arith.constant 0 : i32
    %c0_i32_3 = arith.constant 0 : i32
    return %c0_i32, %2, %c0_i32_2 : i32, i32, i32
  }
  func.func @transform_3(%arg0: i32) -> (i32, i32) {
    %c0_i32 = arith.constant 0 : i32
    %c0_i32_0 = arith.constant 0 : i32
    %c0_i32_1 = arith.constant 0 : i32
    return %c0_i32, %c0_i32_0 : i32, i32
  }
  func.func @transform_4(%arg0: i32) -> (i32, i32) {
    %c0_i32 = arith.constant 0 : i32
    %c0_i32_0 = arith.constant 0 : i32
    %c0_i32_1 = arith.constant 0 : i32
    return %c0_i32, %c0_i32_0 : i32, i32
  }
  func.func @transform_5(%arg0: i32) -> (i32, i32) {
    %c0_i32 = arith.constant 0 : i32
    %c0_i32_0 = arith.constant 0 : i32
    %c0_i32_1 = arith.constant 0 : i32
    return %c0_i32, %c0_i32_0 : i32, i32
  }
  func.func @transform_6(%arg0: i32) -> (i32, i32) {
    %c0_i32 = arith.constant 0 : i32
    %c0_i32_0 = arith.constant 0 : i32
    %c0_i32_1 = arith.constant 0 : i32
    return %c0_i32, %c0_i32_0 : i32, i32
  }
  func.func @transform_7(%arg0: i32) -> (i32, i32, i32) {
    %c0_i32 = arith.constant 0 : i32
    %c0_i32_0 = arith.constant 0 : i32
    %c0_i32_1 = arith.constant 0 : i32
    return %c0_i32, %arg0, %c0_i32_0 : i32, i32, i32
  }
}

</mosaic_0001>

<llo_original>
// kernel: trans_resnet_block.2
$region0: #{trans_resnet_block.2}
  #allocation0 [shape = 'u32[]', space=smem, size = 0x4, offset = 0x4, fixed_abs, tag = 'smem constant byte address 0x4 - core index']
  #allocation1 [shape = 'u32[72,128]{1,0:T(1,128)}', space=vmem, size = 0x9000, scoped, tag = 'internal scratch']
  %s0 = inlined_call_operand.vmem [shape: bf16[2,16,8], index: 0, kind: input, shape index: {}, may-alias: {0,1}]
  %s1 = inlined_call_operand.vmem [shape: bf16[2,16,8], index: 1, kind: input, shape index: {}, may-alias: {0,1}]
  %s2 = inlined_call_operand.vmem [shape: f32[8,128], index: 2, kind: input, shape index: {}]
  %s3 = inlined_call_operand.vmem [shape: bf16[8,384], index: 3, kind: input, shape index: {}]
  %s4 = inlined_call_operand.vmem [shape: f32[2,2,128], index: 4, kind: output, shape index: {}]
  %s5 = sld [smem:[#allocation0]]
  $region135: #{trans_resnet_block.2} parent=0
    _
  %s7 = ssub.s32 1, %s5
  %s8 = scalar_select 0, %s7, %s5
  $region1: #{trans_resnet_block.2} parent=0
    #allocation2 [shape = 'u8[8192]{0}', space=vmem, size = 0x2000, scoped, tag = 'input window, operand 0']
    #allocation3 [shape = 'u8[8192]{0}', space=vmem, size = 0x2000, scoped, tag = 'input window, operand 1']
    loop: start=0, step=1, limit=4
    $region2: #{trans_resnet_block.2} parent=1 // loop_pre_header
      _
    $region3: #{trans_resnet_block.2} parent=1 // loop_header
      %s10 = sphi 0, %s14
      %p11 = scmp.ge.s32.totalorder %s10, 4
      %s17 = sphi 0, %s29
      %s18 = sphi 0, %s25
      %s19 = sphi 0, %s17
      %s20 = sphi 0, %s18
      %s21 = sphi 0, %s19
      %s22 = sphi 0, %s20
      %s34 = sphi 0, %s36
      %s37 = sphi 0, %s34
      %s38 = sphi 0, %s37
      %s54 = sphi 0, %s38
      %s68 = sphi 0, %s70
      %s71 = sphi 0, %s68
      %s72 = sphi 0, %s71
      %s88 = sphi 0, %s72
      %s92 = sphi 0, %s92
      %s94 = sphi 0, %s92
      %s95 = sphi 0, %s94
      %s109 = sphi 0, %s95
      %s113 = sphi 0, %s113
      %s115 = sphi 0, %s113
      %s116 = sphi 0, %s115
      %s130 = sphi 0, %s116
      %s136 = sphi 0, %s138
      %s139 = sphi 0, %s136
      %s140 = sphi 0, %s139
      %s156 = sphi 0, %s140
    $region4: #{trans_resnet_block.2} parent=1 // loop_header_branch
      %13 = sbr.rel (%p11) target = $region8
    $region5: #{trans_resnet_block.2} parent=1 // loop_body
      %s15 = ssub.s32 %s10, 1
      %s16 = ssub.s32 %s10, 2
      %s23 = sadd.s32 1, %s18
      %p24 = scmp.ge.s32.totalorder %s23, 1
      %s25 = scalar_select %p24, 0, %s23
      %s26 = sadd.s32 1, %s17
      %s27 = scalar_select %p24, %s26, %s17
      %p28 = scmp.ge.s32.totalorder %s27, 2
      %s29 = scalar_select %p28, 0, %s27
      %s30 = sadd.s32 %s17, %s18
      %s31 = sadd.s32 %s29, %s25
      %s32 = ssub.s32 %s30, %s31
      %p33 = scmp.eq.s32.totalorder %s32, 0
      %s35 = sadd.s32 %s34, 1
      %s36 = scalar_select %p33, %s34, %s35
      %p39 = pneg %p33
      %p40 = scmp.eq.s32.totalorder %s10, 1
      %p41 = por %p39, %p40
      %p42 = scmp.ne.s32.totalorder %s34, %s37
      %p43 = scmp.eq.s32.totalorder %s10, 0
      %p44 = por %p42, %p43
      %p45 = scmp.ne.s32.totalorder %s34, %s37
      %p46 = scmp.eq.s32.totalorder %s15, 1
      %p47 = por %p45, %p46
      %p48 = scmp.ne.s32.totalorder %s37, %s38
      %p49 = scmp.eq.s32.totalorder %s15, 0
      %p50 = por %p48, %p49
      %p51 = scmp.ne.s32.totalorder %s37, %s38
      %p52 = scmp.eq.s32.totalorder %s16, 1
      %p53 = por %p51, %p52
      %p55 = scmp.ne.s32.totalorder %s38, %s54
      %p56 = scmp.eq.s32.totalorder %s16, 0
      %p57 = por %p55, %p56
      %s58 = sadd.s32 %s17, %s18
      %s59 = sadd.s32 %s58, 1
      %p60 = scmp.lt.s32.totalorder %s59, 1
      %s61 = scalar_select %p60, %s59, 1
      %s62 = sadd.s32 %s29, %s25
      %s63 = sadd.s32 %s62, 1
      %p64 = scmp.lt.s32.totalorder %s63, 1
      %s65 = scalar_select %p64, %s63, 1
      %s66 = ssub.s32 %s61, %s65
      %p67 = scmp.eq.s32.totalorder %s66, 0
      %s69 = sadd.s32 %s68, 1
      %s70 = scalar_select %p67, %s68, %s69
      %p73 = pneg %p67
      %p74 = scmp.eq.s32.totalorder %s10, 1
      %p75 = por %p73, %p74
      %p76 = scmp.ne.s32.totalorder %s68, %s71
      %p77 = scmp.eq.s32.totalorder %s10, 0
      %p78 = por %p76, %p77
      %p79 = scmp.ne.s32.totalorder %s68, %s71
      %p80 = scmp.eq.s32.totalorder %s15, 1
      %p81 = por %p79, %p80
      %p82 = scmp.ne.s32.totalorder %s71, %s72
      %p83 = scmp.eq.s32.totalorder %s15, 0
      %p84 = por %p82, %p83
      %p85 = scmp.ne.s32.totalorder %s71, %s72
      %p86 = scmp.eq.s32.totalorder %s16, 1
      %p87 = por %p85, %p86
      %p89 = scmp.ne.s32.totalorder %s72, %s88
      %p90 = scmp.eq.s32.totalorder %s16, 0
      %p91 = por %p89, %p90
      %s93 = sadd.s32 %s92, 1
      %p96 = scmp.eq.s32.totalorder %s10, 1
      %p97 = scmp.ne.s32.totalorder %s92, %s94
      %p98 = scmp.eq.s32.totalorder %s10, 0
      %p99 = por %p97, %p98
      %p100 = scmp.ne.s32.totalorder %s92, %s94
      %p101 = scmp.eq.s32.totalorder %s15, 1
      %p102 = por %p100, %p101
      %p103 = scmp.ne.s32.totalorder %s94, %s95
      %p104 = scmp.eq.s32.totalorder %s15, 0
      %p105 = por %p103, %p104
      %p106 = scmp.ne.s32.totalorder %s94, %s95
      %p107 = scmp.eq.s32.totalorder %s16, 1
      %p108 = por %p106, %p107
      %p110 = scmp.ne.s32.totalorder %s95, %s109
      %p111 = scmp.eq.s32.totalorder %s16, 0
      %p112 = por %p110, %p111
      %s114 = sadd.s32 %s113, 1
      %p117 = scmp.eq.s32.totalorder %s10, 1
      %p118 = scmp.ne.s32.totalorder %s113, %s115
      %p119 = scmp.eq.s32.totalorder %s10, 0
      %p120 = por %p118, %p119
      %p121 = scmp.ne.s32.totalorder %s113, %s115
      %p122 = scmp.eq.s32.totalorder %s15, 1
      %p123 = por %p121, %p122
      %p124 = scmp.ne.s32.totalorder %s115, %s116
      %p125 = scmp.eq.s32.totalorder %s15, 0
      %p126 = por %p124, %p125
      %p127 = scmp.ne.s32.totalorder %s115, %s116
      %p128 = scmp.eq.s32.totalorder %s16, 1
      %p129 = por %p127, %p128
      %p131 = scmp.ne.s32.totalorder %s116, %s130
      %p132 = scmp.eq.s32.totalorder %s16, 0
      %p133 = por %p131, %p132
      %s134 = ssub.s32 %s17, %s29
      %p135 = scmp.eq.s32.totalorder %s134, 0
      %s137 = sadd.s32 %s136, 1
      %s138 = scalar_select %p135, %s136, %s137
      %p141 = pneg %p135
      %p142 = scmp.eq.s32.totalorder %s10, 1
      %p143 = por %p141, %p142
      %p144 = scmp.ne.s32.totalorder %s136, %s139
      %p145 = scmp.eq.s32.totalorder %s10, 0
      %p146 = por %p144, %p145
      %p147 = scmp.ne.s32.totalorder %s136, %s139
      %p148 = scmp.eq.s32.totalorder %s15, 1
      %p149 = por %p147, %p148
      %p150 = scmp.ne.s32.totalorder %s139, %s140
      %p151 = scmp.eq.s32.totalorder %s15, 0
      %p152 = por %p150, %p151
      %p153 = scmp.ne.s32.totalorder %s139, %s140
      %p154 = scmp.eq.s32.totalorder %s16, 1
      %p155 = por %p153, %p154
      %p157 = scmp.ne.s32.totalorder %s140, %s156
      %p158 = scmp.eq.s32.totalorder %s16, 0
      %p159 = por %p157, %p158
      %p160 = scmp.le.s32.totalorder 1, %s10
      %p161 = scmp.lt.s32.totalorder %s10, 3
      %p162 = pnand %p160, %p161
      %p163 = pneg %p162
      // Predicated region
      $region9: #{trans_resnet_block.2} parent=5 // pred_check
        _
      $region10: #{trans_resnet_block.2} parent=5 // pred_check_branch
        %165 = sbr.rel (%p162) target = $region12
      $region11: #{trans_resnet_block.2} parent=5 // pred_region
        %s166 = ssub.s32 %s10, 1
        // Predicated region
        $region13: #{trans_resnet_block.2} parent=11 // pred_check
          %p167 = pneg %p105
        $region14: #{trans_resnet_block.2} parent=11 // pred_check_branch
          %169 = sbr.rel (%p167) target = $region16
        $region15: #{trans_resnet_block.2} parent=11 // pred_region
          _
        $region16: #{trans_resnet_block.2} parent=11 // pred_fallthru
          _
        // Predicated region
        $region17: #{trans_resnet_block.2} parent=11 // pred_check
          %p170 = pneg %p126
        $region18: #{trans_resnet_block.2} parent=11 // pred_check_branch
          %172 = sbr.rel (%p170) target = $region20
        $region19: #{trans_resnet_block.2} parent=11 // pred_region
          _
        $region20: #{trans_resnet_block.2} parent=11 // pred_fallthru
          _
      $region12: #{trans_resnet_block.2} parent=5 // pred_fallthru
        _
      %p173 = scmp.lt.s32.totalorder %s10, 2
      // Predicated region
      $region21: #{trans_resnet_block.2} parent=5 // pred_check
        %p174 = pneg %p173
      $region22: #{trans_resnet_block.2} parent=5 // pred_check_branch
        %176 = sbr.rel (%p174) target = $region24
      $region23: #{trans_resnet_block.2} parent=5 // pred_region
        // Predicated region
        $region25: #{trans_resnet_block.2} parent=23 // pred_check
          %p177 = pneg %p44
        $region26: #{trans_resnet_block.2} parent=23 // pred_check_branch
          %179 = sbr.rel (%p177) target = $region28
        $region27: #{trans_resnet_block.2} parent=23 // pred_region
          %s180 = sand.u32 %s34, 1
          %s181 = sand.u32 %s34, 1
          %s182 = smul.addr %s181, 8
          %s183 = scalar_lea.vmem [#allocation2], %s182
          %s184 = sadd.s32 %s17, %s18
          %s185 = smul.addr %s184, 4
          %s186 = scalar_lea.vmem %s0, %s185
          // Predicated region
          $region29: #{trans_resnet_block.2} parent=27 // pred_check
            _
          $region30: #{trans_resnet_block.2} parent=27 // pred_check_branch
            %188 = sbr.rel (0) target = $region32
          $region31: #{trans_resnet_block.2} parent=27 // pred_region
            // Predicated region
            $region33: #{trans_resnet_block.2} parent=31 // pred_check
              _
            $region34: #{trans_resnet_block.2} parent=31 // pred_check_branch
              %190 = sbr.rel target = $region36
            $region35: #{trans_resnet_block.2} parent=31 // pred_region
              // Predicated region
              $region48: #{trans_resnet_block.2} parent=35 // pred_check
                _
              $region49: #{trans_resnet_block.2} parent=35 // pred_check_branch
                %208 = sbr.rel (0) target = $region51
              $region50: #{trans_resnet_block.2} parent=35 // pred_region
                loop: start=0, step=1, limit=1
                $region52: #{trans_resnet_block.2} parent=50 // loop_pre_header
                  _
                $region53: #{trans_resnet_block.2} parent=50 // loop_header
                  %s210 = sphi 0, %s214
                  %p211 = scmp.ge.s32.totalorder %s210, 1
                  %s215 = sphi %s186, %s186
                  %s216 = sphi %s183, %s183
                $region54: #{trans_resnet_block.2} parent=50 // loop_header_branch
                  %213 = sbr.rel (%p211) target = $region58
                $region55: #{trans_resnet_block.2} parent=50 // loop_body
                  _
                $region56: #{trans_resnet_block.2} parent=50 // loop_footer
                  %s214 = sadd.s32 1, %s210
                $region57: #{trans_resnet_block.2} parent=50 // loop_footer_branch
                  %209 = sbr.rel target = $region53
                $region58: #{trans_resnet_block.2} parent=50 // loop_exit
                  _
                %s218 = ssub.s32 16, 1
                loop: start=0, step=1, limit=1
                $region59: #{trans_resnet_block.2} parent=50 // loop_pre_header
                  _
                $region60: #{trans_resnet_block.2} parent=50 // loop_header
                  %s220 = sphi 0, %s224
                  %p221 = scmp.ge.s32.totalorder %s220, 1
                  %s225 = sphi %s186, %s186
                  %s226 = sphi %s183, %s183
                $region61: #{trans_resnet_block.2} parent=50 // loop_header_branch
                  %223 = sbr.rel (%p221) target = $region65
                $region62: #{trans_resnet_block.2} parent=50 // loop_body
                  %v227 = vld [vmem:[%s225] sm:%s218]
                  %228 = vst [vmem:[%s226] sm:%s218] %v227
                  %v229 = vld [vmem:[%s225 + $0x8] sm:%s218]
                  %230 = vst [vmem:[%s226 + $0x4] sm:%s218] %v229
                $region63: #{trans_resnet_block.2} parent=50 // loop_footer
                  %s224 = sadd.s32 1, %s220
                $region64: #{trans_resnet_block.2} parent=50 // loop_footer_branch
                  %219 = sbr.rel target = $region60
                $region65: #{trans_resnet_block.2} parent=50 // loop_exit
                  _
              $region51: #{trans_resnet_block.2} parent=35 // pred_fallthru
                _
            $region36: #{trans_resnet_block.2} parent=31 // pred_fallthru
              _
            // Predicated region
            $region37: #{trans_resnet_block.2} parent=31 // pred_check
              _
            $region38: #{trans_resnet_block.2} parent=31 // pred_check_branch
              %192 = sbr.rel (0) target = $region40
            $region39: #{trans_resnet_block.2} parent=31 // pred_region
              %s194 = ssub.s32 16, 1
              loop: start=0, step=1, limit=1
              $region41: #{trans_resnet_block.2} parent=39 // loop_pre_header
                _
              $region42: #{trans_resnet_block.2} parent=39 // loop_header
                %s196 = sphi 0, %s200
                %p197 = scmp.ge.s32.totalorder %s196, 1
                %s201 = sphi %s186, %s186
                %s202 = sphi %s183, %s183
              $region43: #{trans_resnet_block.2} parent=39 // loop_header_branch
                %199 = sbr.rel (%p197) target = $region47
              $region44: #{trans_resnet_block.2} parent=39 // loop_body
                %v203 = vld [vmem:[%s201] sm:%s194]
                %204 = vst [vmem:[%s202] sm:%s194] %v203
                %v205 = vld [vmem:[%s201 + $0x8] sm:%s194]
                %206 = vst [vmem:[%s202 + $0x4] sm:%s194] %v205
              $region45: #{trans_resnet_block.2} parent=39 // loop_footer
                %s200 = sadd.s32 1, %s196
              $region46: #{trans_resnet_block.2} parent=39 // loop_footer_branch
                %195 = sbr.rel target = $region42
              $region47: #{trans_resnet_block.2} parent=39 // loop_exit
                _
            $region40: #{trans_resnet_block.2} parent=31 // pred_fallthru
              _
          $region32: #{trans_resnet_block.2} parent=27 // pred_fallthru
            _
          %231 = vnop
        $region28: #{trans_resnet_block.2} parent=23 // pred_fallthru
          _
        // Predicated region
        $region66: #{trans_resnet_block.2} parent=23 // pred_check
          %p232 = pneg %p78
        $region67: #{trans_resnet_block.2} parent=23 // pred_check_branch
          %234 = sbr.rel (%p232) target = $region69
        $region68: #{trans_resnet_block.2} parent=23 // pred_region
          %s235 = sand.u32 %s68, 1
          %s236 = sand.u32 %s68, 1
          %s237 = smul.addr %s236, 8
          %s238 = scalar_lea.vmem [#allocation3], %s237
          %s239 = sadd.s32 %s17, %s18
          %s240 = sadd.s32 %s239, 1
          %p241 = scmp.lt.s32.totalorder %s240, 1
          %s242 = scalar_select %p241, %s240, 1
          %s243 = smul.addr %s242, 4
          %s244 = scalar_lea.vmem %s1, %s243
          // Predicated region
          $region70: #{trans_resnet_block.2} parent=68 // pred_check
            _
          $region71: #{trans_resnet_block.2} parent=68 // pred_check_branch
            %246 = sbr.rel (0) target = $region73
          $region72: #{trans_resnet_block.2} parent=68 // pred_region
            // Predicated region
            $region74: #{trans_resnet_block.2} parent=72 // pred_check
              _
            $region75: #{trans_resnet_block.2} parent=72 // pred_check_branch
              %248 = sbr.rel target = $region77
            $region76: #{trans_resnet_block.2} parent=72 // pred_region
              // Predicated region
              $region89: #{trans_resnet_block.2} parent=76 // pred_check
                _
              $region90: #{trans_resnet_block.2} parent=76 // pred_check_branch
                %266 = sbr.rel (0) target = $region92
              $region91: #{trans_resnet_block.2} parent=76 // pred_region
                loop: start=0, step=1, limit=1
                $region93: #{trans_resnet_block.2} parent=91 // loop_pre_header
                  _
                $region94: #{trans_resnet_block.2} parent=91 // loop_header
                  %s268 = sphi 0, %s272
                  %p269 = scmp.ge.s32.totalorder %s268, 1
                  %s273 = sphi %s244, %s244
                  %s274 = sphi %s238, %s238
                $region95: #{trans_resnet_block.2} parent=91 // loop_header_branch
                  %271 = sbr.rel (%p269) target = $region99
                $region96: #{trans_resnet_block.2} parent=91 // loop_body
                  _
                $region97: #{trans_resnet_block.2} parent=91 // loop_footer
                  %s272 = sadd.s32 1, %s268
                $region98: #{trans_resnet_block.2} parent=91 // loop_footer_branch
                  %267 = sbr.rel target = $region94
                $region99: #{trans_resnet_block.2} parent=91 // loop_exit
                  _
                %s276 = ssub.s32 16, 1
                loop: start=0, step=1, limit=1
                $region100: #{trans_resnet_block.2} parent=91 // loop_pre_header
                  _
                $region101: #{trans_resnet_block.2} parent=91 // loop_header
                  %s278 = sphi 0, %s282
                  %p279 = scmp.ge.s32.totalorder %s278, 1
                  %s283 = sphi %s244, %s244
                  %s284 = sphi %s238, %s238
                $region102: #{trans_resnet_block.2} parent=91 // loop_header_branch
                  %281 = sbr.rel (%p279) target = $region106
                $region103: #{trans_resnet_block.2} parent=91 // loop_body
                  %v285 = vld [vmem:[%s283] sm:%s276]
                  %286 = vst [vmem:[%s284] sm:%s276] %v285
                  %v287 = vld [vmem:[%s283 + $0x8] sm:%s276]
                  %288 = vst [vmem:[%s284 + $0x4] sm:%s276] %v287
                $region104: #{trans_resnet_block.2} parent=91 // loop_footer
                  %s282 = sadd.s32 1, %s278
                $region105: #{trans_resnet_block.2} parent=91 // loop_footer_branch
                  %277 = sbr.rel target = $region101
                $region106: #{trans_resnet_block.2} parent=91 // loop_exit
                  _
              $region92: #{trans_resnet_block.2} parent=76 // pred_fallthru
                _
            $region77: #{trans_resnet_block.2} parent=72 // pred_fallthru
              _
            // Predicated region
            $region78: #{trans_resnet_block.2} parent=72 // pred_check
              _
            $region79: #{trans_resnet_block.2} parent=72 // pred_check_branch
              %250 = sbr.rel (0) target = $region81
            $region80: #{trans_resnet_block.2} parent=72 // pred_region
              %s252 = ssub.s32 16, 1
              loop: start=0, step=1, limit=1
              $region82: #{trans_resnet_block.2} parent=80 // loop_pre_header
                _
              $region83: #{trans_resnet_block.2} parent=80 // loop_header
                %s254 = sphi 0, %s258
                %p255 = scmp.ge.s32.totalorder %s254, 1
                %s259 = sphi %s244, %s244
                %s260 = sphi %s238, %s238
              $region84: #{trans_resnet_block.2} parent=80 // loop_header_branch
                %257 = sbr.rel (%p255) target = $region88
              $region85: #{trans_resnet_block.2} parent=80 // loop_body
                %v261 = vld [vmem:[%s259] sm:%s252]
                %262 = vst [vmem:[%s260] sm:%s252] %v261
                %v263 = vld [vmem:[%s259 + $0x8] sm:%s252]
                %264 = vst [vmem:[%s260 + $0x4] sm:%s252] %v263
              $region86: #{trans_resnet_block.2} parent=80 // loop_footer
                %s258 = sadd.s32 1, %s254
              $region87: #{trans_resnet_block.2} parent=80 // loop_footer_branch
                %253 = sbr.rel target = $region83
              $region88: #{trans_resnet_block.2} parent=80 // loop_exit
                _
            $region81: #{trans_resnet_block.2} parent=72 // pred_fallthru
              _
          $region73: #{trans_resnet_block.2} parent=68 // pred_fallthru
            _
          %289 = vnop
        $region69: #{trans_resnet_block.2} parent=23 // pred_fallthru
          _
      $region24: #{trans_resnet_block.2} parent=5 // pred_fallthru
        _
      %p290 = scmp.le.s32.totalorder 1, %s10
      %p291 = scmp.lt.s32.totalorder %s10, 3
      %p292 = pnand %p290, %p291
      %p293 = pneg %p292
      // Predicated region
      $region107: #{trans_resnet_block.2} parent=5 // pred_check
        _
      $region108: #{trans_resnet_block.2} parent=5 // pred_check_branch
        %295 = sbr.rel (%p292) target = $region110
      $region109: #{trans_resnet_block.2} parent=5 // pred_region
        %s296 = ssub.s32 %s10, 1
        %s297 = sand.u32 %s37, 1
        %s298 = sand.u32 %s37, 1
        %s299 = smul.addr %s298, 8
        %s300 = scalar_lea.vmem [#allocation2], %s299
        // Predicated region
        $region111: #{trans_resnet_block.2} parent=109 // pred_check
          %p301 = pneg %p50
        $region112: #{trans_resnet_block.2} parent=109 // pred_check_branch
          %303 = sbr.rel (%p301) target = $region114
        $region113: #{trans_resnet_block.2} parent=109 // pred_region
          _
        $region114: #{trans_resnet_block.2} parent=109 // pred_fallthru
          _
        %s304 = sand.u32 %s71, 1
        %s305 = sand.u32 %s71, 1
        %s306 = smul.addr %s305, 8
        %s307 = scalar_lea.vmem [#allocation3], %s306
        // Predicated region
        $region115: #{trans_resnet_block.2} parent=109 // pred_check
          %p308 = pneg %p84
        $region116: #{trans_resnet_block.2} parent=109 // pred_check_branch
          %310 = sbr.rel (%p308) target = $region118
        $region117: #{trans_resnet_block.2} parent=109 // pred_region
          _
        $region118: #{trans_resnet_block.2} parent=109 // pred_fallthru
          _
        %s311 = sand.u32 %s37, 1
        %s312 = sand.u32 %s37, 1
        %s313 = smul.addr %s312, 8
        %s314 = scalar_lea.vmem [#allocation2], %s313
        %p315 = pneg %p50
        %p316 = pneg %p47
        %s317 = sand.u32 %s71, 1
        %s318 = sand.u32 %s71, 1
        %s319 = smul.addr %s318, 8
        %s320 = scalar_lea.vmem [#allocation3], %s319
        %p321 = pneg %p84
        %p322 = pneg %p81
        %p323 = pneg %p105
        %p324 = pneg %p102
        %p325 = pneg %p126
        %p326 = pneg %p123
        %p327 = pneg %p152
        %p328 = pneg %p149
        %p329 = scmp.lt.s32.totalorder %s19, 1
        %s330 = scalar_select %p329, %s19, 1
        %s331 = smul.addr %s330, 2
        %s332 = scalar_lea.vmem %s4, %s331
        %s333 = sadd.s32 %s19, %s20
        %s334 = sadd.s32 %s19, %s20
        %s335 = sadd.s32 %s334, 1
        %p336 = scmp.lt.s32.totalorder %s335, 1
        %s337 = scalar_select %p336, %s335, 1
        %p338 = scmp.lt.s32.totalorder %s19, 1
        %s339 = scalar_select %p338, %s19, 1
        %s340 = smul.addr %s339, 2
        %s341 = scalar_lea.vmem %s4, %s340
        %s343 = sadd.s32 %s19, %s20
        %p344 = scmp.eq.s32.totalorder %s343, 1
        %v345 = vld [vmem:[%s2] sm:$0x1]
        %v346 = vld [vmem:[%s2 + $0x1] sm:$0x1]
        %v347 = vld [vmem:[%s3] sm:$0xff]
        %v348 = vld [vmem:[%s3 + $0x8] sm:$0xf]
        %v349 = vld [vmem:[%s300] sm:$0xf]
        %v350 = vld [vmem:[%s300 + $0x4] sm:$0xf]
        %v351 = vunpack.c.l.bf16 %v349
        %v352 = vunpack.c.l.bf16 %v350
        %v353 = vperm.slane %v345, 0
        %v354 = vmul.f32 %v351, %v353
        %v355 = vmul.f32 %v352, %v353
        %v356 = vperm.slane %v346, 0
        %v357 = vadd.f32 %v354, %v356
        %v358 = vadd.f32 %v355, %v356
        %vm359 = vcmp.ge.f32.partialorder %v357, 0.0
        %vm360 = vcmp.ge.f32.partialorder %v358, 0.0
        %v361 = vmul.f32 %v357, 0.2
        %v362 = vmul.f32 %v358, 0.2
        %v363 = vsel %vm359, %v357, %v361
        %v364 = vsel %vm360, %v358, %v362
        %v365 = vpack.c.bf16 %v364, %v363
        %v368 = vunpack.c.l.b16 %v347
        %v369 = vunpack.c.h.b16 %v347
        %v370 = vunpack.c.l.b16 %v348
        %v371 = vpack.c.b16 %v368, %v368
        %v372 = vpack.c.b16 %v369, %v369
        %v373 = vpack.c.b16 %v370, %v370
        %vm374 = vcmask 64512
        %v376 = vsel %vm374, %v365, 0
        %vm378 = vcmask 1043456
        %v380 = vsel %vm378, %v371, 0
        %v383 = vsel %vm378, %v372, 0
        %v386 = vsel %vm378, %v373, 0
        %388 = vmatpush.bf16.msra.mxu0 0
        %389 = vmatpush.bf16.msra.mxu0 0
        %390 = vmatpush.bf16.msra.mxu0 0
        %391 = vmatpush.bf16.msra.mxu0 0
        %392 = vmatpush.bf16.msra.mxu0 0
        %393 = vmatpush.bf16.msra.mxu0 0
        %394 = vmatpush.bf16.msra.mxu0 0
        %395 = vmatpush.bf16.msra.mxu0 %v380
        %396 = vmatmul.bf16.gmra.mxu0 %v376
        %v397 = vpop.f32.mrf.mxu0
        %v398 = vadd.f32 0.0, %v397
        %v399 = vpop.f32.mrf.mxu0
        %v400 = vadd.f32 0.0, %v399
        %401 = vdwg.mxu0
        %402 = vmatpush.bf16.msra.mxu0 0
        %403 = vmatpush.bf16.msra.mxu0 0
        %404 = vmatpush.bf16.msra.mxu0 0
        %405 = vmatpush.bf16.msra.mxu0 0
        %406 = vmatpush.bf16.msra.mxu0 0
        %407 = vmatpush.bf16.msra.mxu0 0
        %408 = vmatpush.bf16.msra.mxu0 0
        %409 = vmatpush.bf16.msra.mxu0 %v383
        %410 = vmatmul.bf16.gmra.mxu0 %v376
        %v411 = vpop.f32.mrf.mxu0
        %v412 = vadd.f32 0.0, %v411
        %v413 = vpop.f32.mrf.mxu0
        %v414 = vadd.f32 0.0, %v413
        %415 = vdwg.mxu0
        %416 = vmatpush.bf16.msra.mxu0 0
        %417 = vmatpush.bf16.msra.mxu0 0
        %418 = vmatpush.bf16.msra.mxu0 0
        %419 = vmatpush.bf16.msra.mxu0 0
        %420 = vmatpush.bf16.msra.mxu0 0
        %421 = vmatpush.bf16.msra.mxu0 0
        %422 = vmatpush.bf16.msra.mxu0 0
        %423 = vmatpush.bf16.msra.mxu0 %v386
        %424 = vmatmul.bf16.gmra.mxu0 %v376
        %v425 = vpop.f32.mrf.mxu0
        %v426 = vadd.f32 0.0, %v425
        %v427 = vpop.f32.mrf.mxu0
        %v428 = vadd.f32 0.0, %v427
        %429 = vdwg.mxu0
        %v430 = vld [vmem:[%s307] sm:$0xf]
        %v431 = vld [vmem:[%s307 + $0x4] sm:$0xf]
        %v432 = vunpack.c.l.bf16 %v430
        %v433 = vunpack.c.l.bf16 %v431
        %v434 = vmul.f32 %v432, %v353
        %v435 = vmul.f32 %v433, %v353
        %v436 = vadd.f32 %v434, %v356
        %v437 = vadd.f32 %v435, %v356
        %vm438 = vcmp.ge.f32.partialorder %v436, 0.0
        %vm439 = vcmp.ge.f32.partialorder %v437, 0.0
        %v440 = vmul.f32 %v436, 0.2
        %v441 = vmul.f32 %v437, 0.2
        %v442 = vsel %vm438, %v436, %v440
        %v443 = vsel %vm439, %v437, %v441
        %v444 = vpack.c.bf16 %v443, %v442
        %v446 = vsel %vm374, %v444, 0
        %v449 = vsel %vm378, %v347, 0
        %451 = vmatpush.bf16.msra.mxu0 0
        %452 = vmatpush.bf16.msra.mxu0 0
        %453 = vmatpush.bf16.msra.mxu0 0
        %454 = vmatpush.bf16.msra.mxu0 0
        %455 = vmatpush.bf16.msra.mxu0 0
        %456 = vmatpush.bf16.msra.mxu0 0
        %457 = vmatpush.bf16.msra.mxu0 0
        %458 = vmatpush.bf16.msra.mxu0 %v449
        %459 = vmatmul.bf16.gmra.mxu0 %v446
        %v460 = vpop.f32.mrf.mxu0
        %v461 = vadd.f32 0.0, %v460
        %v462 = vpop.f32.mrf.mxu0
        %v463 = vadd.f32 0.0, %v462
        %464 = vdwg.mxu0
        %s465 = scalar_select %p344, 1, 0
        %v466 = vstv %s465
        %vm467 = vcmp.eq.s32.totalorder %v466, 1
        %v468 = vsel %vm467, 0.0, %v461
        %v469 = vsel %vm467, 0.0, %v463
        %v472 = vrot.slane %v398, 1
        %v473 = vrot.slane %v400, 1
        %v478 = vrot.slane %v468, 1
        %v479 = vrot.slane %v469, 1
        %vm482 = vcmask 1046528
        %v483 = vsel %vm482, %v472, %v478
        %v484 = vsel %vm482, %v473, %v479
        %v485 = vadd.f32 %v426, %v483
        %v486 = vadd.f32 %v428, %v484
        %v487 = vadd.f32 %v412, %v414
        %v488 = vrot.slane %v487, 4
        %v489 = vadd.f32 %v487, %v488
        %v490 = vrot.slane %v489, 2
        %v491 = vadd.f32 %v489, %v490
        %v492 = vrot.slane %v491, 1
        %v493 = vadd.f32 %v491, %v492
        %v494 = vadd.f32 %v485, %v486
        %v495 = vrot.slane %v494, 4
        %v496 = vadd.f32 %v494, %v495
        %v497 = vrot.slane %v496, 2
        %v498 = vadd.f32 %v496, %v497
        %v499 = vrot.slane %v498, 1
        %v500 = vadd.f32 %v498, %v499
        %v501 = vadd.f32 %v493, %v500
        %v502 = vmul.f32 %v412, %v412
        %v503 = vmul.f32 %v414, %v414
        %v504 = vadd.f32 %v502, %v503
        %v505 = vrot.slane %v504, 4
        %v506 = vadd.f32 %v504, %v505
        %v507 = vrot.slane %v506, 2
        %v508 = vadd.f32 %v506, %v507
        %v509 = vrot.slane %v508, 1
        %v510 = vadd.f32 %v508, %v509
        %v511 = vmul.f32 %v485, %v485
        %v512 = vmul.f32 %v486, %v486
        %v513 = vadd.f32 %v511, %v512
        %v514 = vrot.slane %v513, 4
        %v515 = vadd.f32 %v513, %v514
        %v516 = vrot.slane %v515, 2
        %v517 = vadd.f32 %v515, %v516
        %v518 = vrot.slane %v517, 1
        %v519 = vadd.f32 %v517, %v518
        %v520 = vadd.f32 %v510, %v519
        %p521 = scmp.eq.s32.totalorder %s20, 0
        // Predicated region
        $region119: #{trans_resnet_block.2} parent=109 // pred_check
          %p522 = pneg %p521
        $region120: #{trans_resnet_block.2} parent=109 // pred_check_branch
          %524 = sbr.rel (%p522) target = $region122
        $region121: #{trans_resnet_block.2} parent=109 // pred_region
          %525 = vst [vmem:[%s341] sm:$0x3] 0.0
        $region122: #{trans_resnet_block.2} parent=109 // pred_fallthru
          _
        %v526 = vld [vmem:[%s341] sm:$0x3]
        %vm527 = vcmask 1040384
        %v528 = vsel %vm527, %v501, %v520
        %v529 = vadd.f32 %v526, %v528
        %530 = vst [vmem:[%s341] sm:$0x3] %v529
        %p531 = scmp.lt.s32.totalorder %s19, 1
        %s532 = scalar_select %p531, %s19, 1
        %s533 = smul.addr %s532, 2
        %s534 = scalar_lea.vmem %s4, %s533
        // Predicated region
        $region123: #{trans_resnet_block.2} parent=109 // pred_check
          %p535 = pneg %p149
        $region124: #{trans_resnet_block.2} parent=109 // pred_check_branch
          %537 = sbr.rel (%p535) target = $region126
        $region125: #{trans_resnet_block.2} parent=109 // pred_region
          _
        $region126: #{trans_resnet_block.2} parent=109 // pred_fallthru
          _
      $region110: #{trans_resnet_block.2} parent=5 // pred_fallthru
        _
      %p538 = scmp.le.s32.totalorder 2, %s10
      // Predicated region
      $region127: #{trans_resnet_block.2} parent=5 // pred_check
        %p539 = pneg %p538
      $region128: #{trans_resnet_block.2} parent=5 // pred_check_branch
        %541 = sbr.rel (%p539) target = $region130
      $region129: #{trans_resnet_block.2} parent=5 // pred_region
        %s542 = ssub.s32 %s10, 2
        // Predicated region
        $region131: #{trans_resnet_block.2} parent=129 // pred_check
          %p543 = pneg %p155
        $region132: #{trans_resnet_block.2} parent=129 // pred_check_branch
          %545 = sbr.rel (%p543) target = $region134
        $region133: #{trans_resnet_block.2} parent=129 // pred_region
          %p546 = scmp.lt.s32.totalorder %s21, 1
          %s547 = scalar_select %p546, %s21, 1
          %s548 = smul.addr %s547, 2
          %s549 = scalar_lea.vmem %s4, %s548
        $region134: #{trans_resnet_block.2} parent=129 // pred_fallthru
          _
      $region130: #{trans_resnet_block.2} parent=5 // pred_fallthru
        _
    $region6: #{trans_resnet_block.2} parent=1 // loop_footer
      %s14 = sadd.s32 1, %s10
    $region7: #{trans_resnet_block.2} parent=1 // loop_footer_branch
      %9 = sbr.rel target = $region3
    $region8: #{trans_resnet_block.2} parent=1 // loop_exit
      _

// kernel: trans_resnet_block.3
$region0: #{trans_resnet_block.3}
  #allocation0 [shape = 'u32[]', space=smem, size = 0x4, offset = 0x4, fixed_abs, tag = 'smem constant byte address 0x4 - core index']
  #allocation1 [shape = 'u32[72,128]{1,0:T(1,128)}', space=vmem, size = 0x9000, scoped, tag = 'internal scratch']
  %s0 = inlined_call_operand.vmem [shape: bf16[2,16,8], index: 0, kind: input, shape index: {}, may-alias: {0,1,2}]
  %s1 = inlined_call_operand.vmem [shape: bf16[2,16,8], index: 1, kind: input, shape index: {}, may-alias: {0,1,2}]
  %s2 = inlined_call_operand.vmem [shape: bf16[2,16,8], index: 2, kind: input, shape index: {}, may-alias: {0,1,2}]
  %s3 = inlined_call_operand.vmem [shape: f32[8,128], index: 3, kind: input, shape index: {}]
  %s4 = inlined_call_operand.vmem [shape: bf16[8,384], index: 4, kind: input, shape index: {}]
  %s5 = inlined_call_operand.vmem [shape: bf16[128,384], index: 5, kind: input, shape index: {}]
  %s6 = inlined_call_operand.vmem [shape: bf16[8,384], index: 6, kind: input, shape index: {}]
  %s7 = inlined_call_operand.vmem [shape: f32[2,16,256], index: 7, kind: output, shape index: {}]
  %s8 = sld [smem:[#allocation0]]
  $region203: #{trans_resnet_block.3} parent=0
    _
  %s10 = ssub.s32 1, %s8
  %s11 = scalar_select 0, %s10, %s8
  $region1: #{trans_resnet_block.3} parent=0
    #allocation2 [shape = 'u8[8192]{0}', space=vmem, size = 0x2000, scoped, tag = 'input window, operand 0']
    #allocation3 [shape = 'u8[8192]{0}', space=vmem, size = 0x2000, scoped, tag = 'input window, operand 1']
    #allocation4 [shape = 'u8[8192]{0}', space=vmem, size = 0x2000, scoped, tag = 'input window, operand 2']
    #allocation5 [shape = 'u8[32768]{0}', space=vmem, size = 0x8000, scoped, tag = 'output window, operand 0']
    loop: start=0, step=1, limit=4
    $region2: #{trans_resnet_block.3} parent=1 // loop_pre_header
      _
    $region3: #{trans_resnet_block.3} parent=1 // loop_header
      %s13 = sphi 0, %s17
      %p14 = scmp.ge.s32.totalorder %s13, 4
      %s23 = sphi 0, %s25
      %s26 = sphi 0, %s23
      %s27 = sphi 0, %s26
      %s43 = sphi 0, %s27
      %s55 = sphi 0, %s57
      %s58 = sphi 0, %s55
      %s59 = sphi 0, %s58
      %s75 = sphi 0, %s59
      %s87 = sphi 0, %s89
      %s90 = sphi 0, %s87
      %s91 = sphi 0, %s90
      %s107 = sphi 0, %s91
      %s111 = sphi 0, %s111
      %s113 = sphi 0, %s111
      %s114 = sphi 0, %s113
      %s128 = sphi 0, %s114
      %s132 = sphi 0, %s132
      %s134 = sphi 0, %s132
      %s135 = sphi 0, %s134
      %s149 = sphi 0, %s135
      %s153 = sphi 0, %s153
      %s155 = sphi 0, %s153
      %s156 = sphi 0, %s155
      %s170 = sphi 0, %s156
      %s174 = sphi 0, %s174
      %s176 = sphi 0, %s174
      %s177 = sphi 0, %s176
      %s191 = sphi 0, %s177
      %s197 = sphi 0, %s199
      %s200 = sphi 0, %s197
      %s201 = sphi 0, %s200
      %s217 = sphi 0, %s201
    $region4: #{trans_resnet_block.3} parent=1 // loop_header_branch
      %16 = sbr.rel (%p14) target = $region8
    $region5: #{trans_resnet_block.3} parent=1 // loop_body
      %s18 = ssub.s32 %s13, 1
      %s19 = ssub.s32 %s13, 2
      %s20 = sadd.s32 %s13, 1
      %s21 = ssub.s32 %s13, %s20
      %p22 = scmp.eq.s32.totalorder %s21, 0
      %s24 = sadd.s32 %s23, 1
      %s25 = scalar_select %p22, %s23, %s24
      %p28 = pneg %p22
      %p29 = scmp.eq.s32.totalorder %s13, 1
      %p30 = por %p28, %p29
      %p31 = scmp.ne.s32.totalorder %s23, %s26
      %p32 = scmp.eq.s32.totalorder %s13, 0
      %p33 = por %p31, %p32
      %p34 = scmp.ne.s32.totalorder %s23, %s26
      %p35 = scmp.eq.s32.totalorder %s18, 1
      %p36 = por %p34, %p35
      %p37 = scmp.ne.s32.totalorder %s26, %s27
      %p38 = scmp.eq.s32.totalorder %s18, 0
      %p39 = por %p37, %p38
      %p40 = scmp.ne.s32.totalorder %s26, %s27
      %p41 = scmp.eq.s32.totalorder %s19, 1
      %p42 = por %p40, %p41
      %p44 = scmp.ne.s32.totalorder %s27, %s43
      %p45 = scmp.eq.s32.totalorder %s19, 0
      %p46 = por %p44, %p45
      %s47 = ssub.s32 %s13, 1
      %p48 = scmp.gt.s32.totalorder %s47, 0
      %s49 = scalar_select %p48, %s47, 0
      %s50 = ssub.s32 %s20, 1
      %p51 = scmp.gt.s32.totalorder %s50, 0
      %s52 = scalar_select %p51, %s50, 0
      %s53 = ssub.s32 %s49, %s52
      %p54 = scmp.eq.s32.totalorder %s53, 0
      %s56 = sadd.s32 %s55, 1
      %s57 = scalar_select %p54, %s55, %s56
      %p60 = pneg %p54
      %p61 = scmp.eq.s32.totalorder %s13, 1
      %p62 = por %p60, %p61
      %p63 = scmp.ne.s32.totalorder %s55, %s58
      %p64 = scmp.eq.s32.totalorder %s13, 0
      %p65 = por %p63, %p64
      %p66 = scmp.ne.s32.totalorder %s55, %s58
      %p67 = scmp.eq.s32.totalorder %s18, 1
      %p68 = por %p66, %p67
      %p69 = scmp.ne.s32.totalorder %s58, %s59
      %p70 = scmp.eq.s32.totalorder %s18, 0
      %p71 = por %p69, %p70
      %p72 = scmp.ne.s32.totalorder %s58, %s59
      %p73 = scmp.eq.s32.totalorder %s19, 1
      %p74 = por %p72, %p73
      %p76 = scmp.ne.s32.totalorder %s59, %s75
      %p77 = scmp.eq.s32.totalorder %s19, 0
      %p78 = por %p76, %p77
      %s79 = sadd.s32 %s13, 1
      %p80 = scmp.lt.s32.totalorder %s79, 1
      %s81 = scalar_select %p80, %s79, 1
      %s82 = sadd.s32 %s20, 1
      %p83 = scmp.lt.s32.totalorder %s82, 1
      %s84 = scalar_select %p83, %s82, 1
      %s85 = ssub.s32 %s81, %s84
      %p86 = scmp.eq.s32.totalorder %s85, 0
      %s88 = sadd.s32 %s87, 1
      %s89 = scalar_select %p86, %s87, %s88
      %p92 = pneg %p86
      %p93 = scmp.eq.s32.totalorder %s13, 1
      %p94 = por %p92, %p93
      %p95 = scmp.ne.s32.totalorder %s87, %s90
      %p96 = scmp.eq.s32.totalorder %s13, 0
      %p97 = por %p95, %p96
      %p98 = scmp.ne.s32.totalorder %s87, %s90
      %p99 = scmp.eq.s32.totalorder %s18, 1
      %p100 = por %p98, %p99
      %p101 = scmp.ne.s32.totalorder %s90, %s91
      %p102 = scmp.eq.s32.totalorder %s18, 0
      %p103 = por %p101, %p102
      %p104 = scmp.ne.s32.totalorder %s90, %s91
      %p105 = scmp.eq.s32.totalorder %s19, 1
      %p106 = por %p104, %p105
      %p108 = scmp.ne.s32.totalorder %s91, %s107
      %p109 = scmp.eq.s32.totalorder %s19, 0
      %p110 = por %p108, %p109
      %s112 = sadd.s32 %s111, 1
      %p115 = scmp.eq.s32.totalorder %s13, 1
      %p116 = scmp.ne.s32.totalorder %s111, %s113
      %p117 = scmp.eq.s32.totalorder %s13, 0
      %p118 = por %p116, %p117
      %p119 = scmp.ne.s32.totalorder %s111, %s113
      %p120 = scmp.eq.s32.totalorder %s18, 1
      %p121 = por %p119, %p120
      %p122 = scmp.ne.s32.totalorder %s113, %s114
      %p123 = scmp.eq.s32.totalorder %s18, 0
      %p124 = por %p122, %p123
      %p125 = scmp.ne.s32.totalorder %s113, %s114
      %p126 = scmp.eq.s32.totalorder %s19, 1
      %p127 = por %p125, %p126
      %p129 = scmp.ne.s32.totalorder %s114, %s128
      %p130 = scmp.eq.s32.totalorder %s19, 0
      %p131 = por %p129, %p130
      %s133 = sadd.s32 %s132, 1
      %p136 = scmp.eq.s32.totalorder %s13, 1
      %p137 = scmp.ne.s32.totalorder %s132, %s134
      %p138 = scmp.eq.s32.totalorder %s13, 0
      %p139 = por %p137, %p138
      %p140 = scmp.ne.s32.totalorder %s132, %s134
      %p141 = scmp.eq.s32.totalorder %s18, 1
      %p142 = por %p140, %p141
      %p143 = scmp.ne.s32.totalorder %s134, %s135
      %p144 = scmp.eq.s32.totalorder %s18, 0
      %p145 = por %p143, %p144
      %p146 = scmp.ne.s32.totalorder %s134, %s135
      %p147 = scmp.eq.s32.totalorder %s19, 1
      %p148 = por %p146, %p147
      %p150 = scmp.ne.s32.totalorder %s135, %s149
      %p151 = scmp.eq.s32.totalorder %s19, 0
      %p152 = por %p150, %p151
      %s154 = sadd.s32 %s153, 1
      %p157 = scmp.eq.s32.totalorder %s13, 1
      %p158 = scmp.ne.s32.totalorder %s153, %s155
      %p159 = scmp.eq.s32.totalorder %s13, 0
      %p160 = por %p158, %p159
      %p161 = scmp.ne.s32.totalorder %s153, %s155
      %p162 = scmp.eq.s32.totalorder %s18, 1
      %p163 = por %p161, %p162
      %p164 = scmp.ne.s32.totalorder %s155, %s156
      %p165 = scmp.eq.s32.totalorder %s18, 0
      %p166 = por %p164, %p165
      %p167 = scmp.ne.s32.totalorder %s155, %s156
      %p168 = scmp.eq.s32.totalorder %s19, 1
      %p169 = por %p167, %p168
      %p171 = scmp.ne.s32.totalorder %s156, %s170
      %p172 = scmp.eq.s32.totalorder %s19, 0
      %p173 = por %p171, %p172
      %s175 = sadd.s32 %s174, 1
      %p178 = scmp.eq.s32.totalorder %s13, 1
      %p179 = scmp.ne.s32.totalorder %s174, %s176
      %p180 = scmp.eq.s32.totalorder %s13, 0
      %p181 = por %p179, %p180
      %p182 = scmp.ne.s32.totalorder %s174, %s176
      %p183 = scmp.eq.s32.totalorder %s18, 1
      %p184 = por %p182, %p183
      %p185 = scmp.ne.s32.totalorder %s176, %s177
      %p186 = scmp.eq.s32.totalorder %s18, 0
      %p187 = por %p185, %p186
      %p188 = scmp.ne.s32.totalorder %s176, %s177
      %p189 = scmp.eq.s32.totalorder %s19, 1
      %p190 = por %p188, %p189
      %p192 = scmp.ne.s32.totalorder %s177, %s191
      %p193 = scmp.eq.s32.totalorder %s19, 0
      %p194 = por %p192, %p193
      %s195 = ssub.s32 %s13, %s20
      %p196 = scmp.eq.s32.totalorder %s195, 0
      %s198 = sadd.s32 %s197, 1
      %s199 = scalar_select %p196, %s197, %s198
      %p202 = pneg %p196
      %p203 = scmp.eq.s32.totalorder %s13, 1
      %p204 = por %p202, %p203
      %p205 = scmp.ne.s32.totalorder %s197, %s200
      %p206 = scmp.eq.s32.totalorder %s13, 0
      %p207 = por %p205, %p206
      %p208 = scmp.ne.s32.totalorder %s197, %s200
      %p209 = scmp.eq.s32.totalorder %s18, 1
      %p210 = por %p208, %p209
      %p211 = scmp.ne.s32.totalorder %s200, %s201
      %p212 = scmp.eq.s32.totalorder %s18, 0
      %p213 = por %p211, %p212
      %p214 = scmp.ne.s32.totalorder %s200, %s201
      %p215 = scmp.eq.s32.totalorder %s19, 1
      %p216 = por %p214, %p215
      %p218 = scmp.ne.s32.totalorder %s201, %s217
      %p219 = scmp.eq.s32.totalorder %s19, 0
      %p220 = por %p218, %p219
      %p221 = scmp.le.s32.totalorder 1, %s13
      %p222 = scmp.lt.s32.totalorder %s13, 3
      %p223 = pnand %p221, %p222
      %p224 = pneg %p223
      // Predicated region
      $region9: #{trans_resnet_block.3} parent=5 // pred_check
        _
      $region10: #{trans_resnet_block.3} parent=5 // pred_check_branch
        %226 = sbr.rel (%p223) target = $region12
      $region11: #{trans_resnet_block.3} parent=5 // pred_region
        %s227 = ssub.s32 %s13, 1
        // Predicated region
        $region13: #{trans_resnet_block.3} parent=11 // pred_check
          %p228 = pneg %p124
        $region14: #{trans_resnet_block.3} parent=11 // pred_check_branch
          %230 = sbr.rel (%p228) target = $region16
        $region15: #{trans_resnet_block.3} parent=11 // pred_region
          _
        $region16: #{trans_resnet_block.3} parent=11 // pred_fallthru
          _
        // Predicated region
        $region17: #{trans_resnet_block.3} parent=11 // pred_check
          %p231 = pneg %p145
        $region18: #{trans_resnet_block.3} parent=11 // pred_check_branch
          %233 = sbr.rel (%p231) target = $region20
        $region19: #{trans_resnet_block.3} parent=11 // pred_region
          _
        $region20: #{trans_resnet_block.3} parent=11 // pred_fallthru
          _
        // Predicated region
        $region21: #{trans_resnet_block.3} parent=11 // pred_check
          %p234 = pneg %p166
        $region22: #{trans_resnet_block.3} parent=11 // pred_check_branch
          %236 = sbr.rel (%p234) target = $region24
        $region23: #{trans_resnet_block.3} parent=11 // pred_region
          _
        $region24: #{trans_resnet_block.3} parent=11 // pred_fallthru
          _
        // Predicated region
        $region25: #{trans_resnet_block.3} parent=11 // pred_check
          %p237 = pneg %p187
        $region26: #{trans_resnet_block.3} parent=11 // pred_check_branch
          %239 = sbr.rel (%p237) target = $region28
        $region27: #{trans_resnet_block.3} parent=11 // pred_region
          _
        $region28: #{trans_resnet_block.3} parent=11 // pred_fallthru
          _
      $region12: #{trans_resnet_block.3} parent=5 // pred_fallthru
        _
      %p240 = scmp.lt.s32.totalorder %s13, 2
      // Predicated region
      $region29: #{trans_resnet_block.3} parent=5 // pred_check
        %p241 = pneg %p240
      $region30: #{trans_resnet_block.3} parent=5 // pred_check_branch
        %243 = sbr.rel (%p241) target = $region32
      $region31: #{trans_resnet_block.3} parent=5 // pred_region
        // Predicated region
        $region33: #{trans_resnet_block.3} parent=31 // pred_check
          %p244 = pneg %p33
        $region34: #{trans_resnet_block.3} parent=31 // pred_check_branch
          %246 = sbr.rel (%p244) target = $region36
        $region35: #{trans_resnet_block.3} parent=31 // pred_region
          %s247 = sand.u32 %s23, 1
          %s248 = sand.u32 %s23, 1
          %s249 = smul.addr %s248, 8
          %s250 = scalar_lea.vmem [#allocation2], %s249
          %s251 = smul.addr %s13, 4
          %s252 = scalar_lea.vmem %s0, %s251
          // Predicated region
          $region37: #{trans_resnet_block.3} parent=35 // pred_check
            _
          $region38: #{trans_resnet_block.3} parent=35 // pred_check_branch
            %254 = sbr.rel (0) target = $region40
          $region39: #{trans_resnet_block.3} parent=35 // pred_region
            // Predicated region
            $region41: #{trans_resnet_block.3} parent=39 // pred_check
              _
            $region42: #{trans_resnet_block.3} parent=39 // pred_check_branch
              %256 = sbr.rel target = $region44
            $region43: #{trans_resnet_block.3} parent=39 // pred_region
              // Predicated region
              $region56: #{trans_resnet_block.3} parent=43 // pred_check
                _
              $region57: #{trans_resnet_block.3} parent=43 // pred_check_branch
                %274 = sbr.rel (0) target = $region59
              $region58: #{trans_resnet_block.3} parent=43 // pred_region
                loop: start=0, step=1, limit=1
                $region60: #{trans_resnet_block.3} parent=58 // loop_pre_header
                  _
                $region61: #{trans_resnet_block.3} parent=58 // loop_header
                  %s276 = sphi 0, %s280
                  %p277 = scmp.ge.s32.totalorder %s276, 1
                  %s281 = sphi %s252, %s252
                  %s282 = sphi %s250, %s250
                $region62: #{trans_resnet_block.3} parent=58 // loop_header_branch
                  %279 = sbr.rel (%p277) target = $region66
                $region63: #{trans_resnet_block.3} parent=58 // loop_body
                  _
                $region64: #{trans_resnet_block.3} parent=58 // loop_footer
                  %s280 = sadd.s32 1, %s276
                $region65: #{trans_resnet_block.3} parent=58 // loop_footer_branch
                  %275 = sbr.rel target = $region61
                $region66: #{trans_resnet_block.3} parent=58 // loop_exit
                  _
                %s284 = ssub.s32 16, 1
                loop: start=0, step=1, limit=1
                $region67: #{trans_resnet_block.3} parent=58 // loop_pre_header
                  _
                $region68: #{trans_resnet_block.3} parent=58 // loop_header
                  %s286 = sphi 0, %s290
                  %p287 = scmp.ge.s32.totalorder %s286, 1
                  %s291 = sphi %s252, %s252
                  %s292 = sphi %s250, %s250
                $region69: #{trans_resnet_block.3} parent=58 // loop_header_branch
                  %289 = sbr.rel (%p287) target = $region73
                $region70: #{trans_resnet_block.3} parent=58 // loop_body
                  %v293 = vld [vmem:[%s291] sm:%s284]
                  %294 = vst [vmem:[%s292] sm:%s284] %v293
                  %v295 = vld [vmem:[%s291 + $0x8] sm:%s284]
                  %296 = vst [vmem:[%s292 + $0x4] sm:%s284] %v295
                $region71: #{trans_resnet_block.3} parent=58 // loop_footer
                  %s290 = sadd.s32 1, %s286
                $region72: #{trans_resnet_block.3} parent=58 // loop_footer_branch
                  %285 = sbr.rel target = $region68
                $region73: #{trans_resnet_block.3} parent=58 // loop_exit
                  _
              $region59: #{trans_resnet_block.3} parent=43 // pred_fallthru
                _
            $region44: #{trans_resnet_block.3} parent=39 // pred_fallthru
              _
            // Predicated region
            $region45: #{trans_resnet_block.3} parent=39 // pred_check
              _
            $region46: #{trans_resnet_block.3} parent=39 // pred_check_branch
              %258 = sbr.rel (0) target = $region48
            $region47: #{trans_resnet_block.3} parent=39 // pred_region
              %s260 = ssub.s32 16, 1
              loop: start=0, step=1, limit=1
              $region49: #{trans_resnet_block.3} parent=47 // loop_pre_header
                _
              $region50: #{trans_resnet_block.3} parent=47 // loop_header
                %s262 = sphi 0, %s266
                %p263 = scmp.ge.s32.totalorder %s262, 1
                %s267 = sphi %s252, %s252
                %s268 = sphi %s250, %s250
              $region51: #{trans_resnet_block.3} parent=47 // loop_header_branch
                %265 = sbr.rel (%p263) target = $region55
              $region52: #{trans_resnet_block.3} parent=47 // loop_body
                %v269 = vld [vmem:[%s267] sm:%s260]
                %270 = vst [vmem:[%s268] sm:%s260] %v269
                %v271 = vld [vmem:[%s267 + $0x8] sm:%s260]
                %272 = vst [vmem:[%s268 + $0x4] sm:%s260] %v271
              $region53: #{trans_resnet_block.3} parent=47 // loop_footer
                %s266 = sadd.s32 1, %s262
              $region54: #{trans_resnet_block.3} parent=47 // loop_footer_branch
                %261 = sbr.rel target = $region50
              $region55: #{trans_resnet_block.3} parent=47 // loop_exit
                _
            $region48: #{trans_resnet_block.3} parent=39 // pred_fallthru
              _
          $region40: #{trans_resnet_block.3} parent=35 // pred_fallthru
            _
          %297 = vnop
        $region36: #{trans_resnet_block.3} parent=31 // pred_fallthru
          _
        // Predicated region
        $region74: #{trans_resnet_block.3} parent=31 // pred_check
          %p298 = pneg %p65
        $region75: #{trans_resnet_block.3} parent=31 // pred_check_branch
          %300 = sbr.rel (%p298) target = $region77
        $region76: #{trans_resnet_block.3} parent=31 // pred_region
          %s301 = sand.u32 %s55, 1
          %s302 = sand.u32 %s55, 1
          %s303 = smul.addr %s302, 8
          %s304 = scalar_lea.vmem [#allocation3], %s303
          %s305 = ssub.s32 %s13, 1
          %p306 = scmp.gt.s32.totalorder %s305, 0
          %s307 = scalar_select %p306, %s305, 0
          %s308 = smul.addr %s307, 4
          %s309 = scalar_lea.vmem %s1, %s308
          // Predicated region
          $region78: #{trans_resnet_block.3} parent=76 // pred_check
            _
          $region79: #{trans_resnet_block.3} parent=76 // pred_check_branch
            %311 = sbr.rel (0) target = $region81
          $region80: #{trans_resnet_block.3} parent=76 // pred_region
            // Predicated region
            $region82: #{trans_resnet_block.3} parent=80 // pred_check
              _
            $region83: #{trans_resnet_block.3} parent=80 // pred_check_branch
              %313 = sbr.rel target = $region85
            $region84: #{trans_resnet_block.3} parent=80 // pred_region
              // Predicated region
              $region97: #{trans_resnet_block.3} parent=84 // pred_check
                _
              $region98: #{trans_resnet_block.3} parent=84 // pred_check_branch
                %331 = sbr.rel (0) target = $region100
              $region99: #{trans_resnet_block.3} parent=84 // pred_region
                loop: start=0, step=1, limit=1
                $region101: #{trans_resnet_block.3} parent=99 // loop_pre_header
                  _
                $region102: #{trans_resnet_block.3} parent=99 // loop_header
                  %s333 = sphi 0, %s337
                  %p334 = scmp.ge.s32.totalorder %s333, 1
                  %s338 = sphi %s309, %s309
                  %s339 = sphi %s304, %s304
                $region103: #{trans_resnet_block.3} parent=99 // loop_header_branch
                  %336 = sbr.rel (%p334) target = $region107
                $region104: #{trans_resnet_block.3} parent=99 // loop_body
                  _
                $region105: #{trans_resnet_block.3} parent=99 // loop_footer
                  %s337 = sadd.s32 1, %s333
                $region106: #{trans_resnet_block.3} parent=99 // loop_footer_branch
                  %332 = sbr.rel target = $region102
                $region107: #{trans_resnet_block.3} parent=99 // loop_exit
                  _
                %s341 = ssub.s32 16, 1
                loop: start=0, step=1, limit=1
                $region108: #{trans_resnet_block.3} parent=99 // loop_pre_header
                  _
                $region109: #{trans_resnet_block.3} parent=99 // loop_header
                  %s343 = sphi 0, %s347
                  %p344 = scmp.ge.s32.totalorder %s343, 1
                  %s348 = sphi %s309, %s309
                  %s349 = sphi %s304, %s304
                $region110: #{trans_resnet_block.3} parent=99 // loop_header_branch
                  %346 = sbr.rel (%p344) target = $region114
                $region111: #{trans_resnet_block.3} parent=99 // loop_body
                  %v350 = vld [vmem:[%s348] sm:%s341]
                  %351 = vst [vmem:[%s349] sm:%s341] %v350
                  %v352 = vld [vmem:[%s348 + $0x8] sm:%s341]
                  %353 = vst [vmem:[%s349 + $0x4] sm:%s341] %v352
                $region112: #{trans_resnet_block.3} parent=99 // loop_footer
                  %s347 = sadd.s32 1, %s343
                $region113: #{trans_resnet_block.3} parent=99 // loop_footer_branch
                  %342 = sbr.rel target = $region109
                $region114: #{trans_resnet_block.3} parent=99 // loop_exit
                  _
              $region100: #{trans_resnet_block.3} parent=84 // pred_fallthru
                _
            $region85: #{trans_resnet_block.3} parent=80 // pred_fallthru
              _
            // Predicated region
            $region86: #{trans_resnet_block.3} parent=80 // pred_check
              _
            $region87: #{trans_resnet_block.3} parent=80 // pred_check_branch
              %315 = sbr.rel (0) target = $region89
            $region88: #{trans_resnet_block.3} parent=80 // pred_region
              %s317 = ssub.s32 16, 1
              loop: start=0, step=1, limit=1
              $region90: #{trans_resnet_block.3} parent=88 // loop_pre_header
                _
              $region91: #{trans_resnet_block.3} parent=88 // loop_header
                %s319 = sphi 0, %s323
                %p320 = scmp.ge.s32.totalorder %s319, 1
                %s324 = sphi %s309, %s309
                %s325 = sphi %s304, %s304
              $region92: #{trans_resnet_block.3} parent=88 // loop_header_branch
                %322 = sbr.rel (%p320) target = $region96
              $region93: #{trans_resnet_block.3} parent=88 // loop_body
                %v326 = vld [vmem:[%s324] sm:%s317]
                %327 = vst [vmem:[%s325] sm:%s317] %v326
                %v328 = vld [vmem:[%s324 + $0x8] sm:%s317]
                %329 = vst [vmem:[%s325 + $0x4] sm:%s317] %v328
              $region94: #{trans_resnet_block.3} parent=88 // loop_footer
                %s323 = sadd.s32 1, %s319
              $region95: #{trans_resnet_block.3} parent=88 // loop_footer_branch
                %318 = sbr.rel target = $region91
              $region96: #{trans_resnet_block.3} parent=88 // loop_exit
                _
            $region89: #{trans_resnet_block.3} parent=80 // pred_fallthru
              _
          $region81: #{trans_resnet_block.3} parent=76 // pred_fallthru
            _
          %354 = vnop
        $region77: #{trans_resnet_block.3} parent=31 // pred_fallthru
          _
        // Predicated region
        $region115: #{trans_resnet_block.3} parent=31 // pred_check
          %p355 = pneg %p97
        $region116: #{trans_resnet_block.3} parent=31 // pred_check_branch
          %357 = sbr.rel (%p355) target = $region118
        $region117: #{trans_resnet_block.3} parent=31 // pred_region
          %s358 = sand.u32 %s87, 1
          %s359 = sand.u32 %s87, 1
          %s360 = smul.addr %s359, 8
          %s361 = scalar_lea.vmem [#allocation4], %s360
          %s362 = sadd.s32 %s13, 1
          %p363 = scmp.lt.s32.totalorder %s362, 1
          %s364 = scalar_select %p363, %s362, 1
          %s365 = smul.addr %s364, 4
          %s366 = scalar_lea.vmem %s2, %s365
          // Predicated region
          $region119: #{trans_resnet_block.3} parent=117 // pred_check
            _
          $region120: #{trans_resnet_block.3} parent=117 // pred_check_branch
            %368 = sbr.rel (0) target = $region122
          $region121: #{trans_resnet_block.3} parent=117 // pred_region
            // Predicated region
            $region123: #{trans_resnet_block.3} parent=121 // pred_check
              _
            $region124: #{trans_resnet_block.3} parent=121 // pred_check_branch
              %370 = sbr.rel target = $region126
            $region125: #{trans_resnet_block.3} parent=121 // pred_region
              // Predicated region
              $region138: #{trans_resnet_block.3} parent=125 // pred_check
                _
              $region139: #{trans_resnet_block.3} parent=125 // pred_check_branch
                %388 = sbr.rel (0) target = $region141
              $region140: #{trans_resnet_block.3} parent=125 // pred_region
                loop: start=0, step=1, limit=1
                $region142: #{trans_resnet_block.3} parent=140 // loop_pre_header
                  _
                $region143: #{trans_resnet_block.3} parent=140 // loop_header
                  %s390 = sphi 0, %s394
                  %p391 = scmp.ge.s32.totalorder %s390, 1
                  %s395 = sphi %s366, %s366
                  %s396 = sphi %s361, %s361
                $region144: #{trans_resnet_block.3} parent=140 // loop_header_branch
                  %393 = sbr.rel (%p391) target = $region148
                $region145: #{trans_resnet_block.3} parent=140 // loop_body
                  _
                $region146: #{trans_resnet_block.3} parent=140 // loop_footer
                  %s394 = sadd.s32 1, %s390
                $region147: #{trans_resnet_block.3} parent=140 // loop_footer_branch
                  %389 = sbr.rel target = $region143
                $region148: #{trans_resnet_block.3} parent=140 // loop_exit
                  _
                %s398 = ssub.s32 16, 1
                loop: start=0, step=1, limit=1
                $region149: #{trans_resnet_block.3} parent=140 // loop_pre_header
                  _
                $region150: #{trans_resnet_block.3} parent=140 // loop_header
                  %s400 = sphi 0, %s404
                  %p401 = scmp.ge.s32.totalorder %s400, 1
                  %s405 = sphi %s366, %s366
                  %s406 = sphi %s361, %s361
                $region151: #{trans_resnet_block.3} parent=140 // loop_header_branch
                  %403 = sbr.rel (%p401) target = $region155
                $region152: #{trans_resnet_block.3} parent=140 // loop_body
                  %v407 = vld [vmem:[%s405] sm:%s398]
                  %408 = vst [vmem:[%s406] sm:%s398] %v407
                  %v409 = vld [vmem:[%s405 + $0x8] sm:%s398]
                  %410 = vst [vmem:[%s406 + $0x4] sm:%s398] %v409
                $region153: #{trans_resnet_block.3} parent=140 // loop_footer
                  %s404 = sadd.s32 1, %s400
                $region154: #{trans_resnet_block.3} parent=140 // loop_footer_branch
                  %399 = sbr.rel target = $region150
                $region155: #{trans_resnet_block.3} parent=140 // loop_exit
                  _
              $region141: #{trans_resnet_block.3} parent=125 // pred_fallthru
                _
            $region126: #{trans_resnet_block.3} parent=121 // pred_fallthru
              _
            // Predicated region
            $region127: #{trans_resnet_block.3} parent=121 // pred_check
              _
            $region128: #{trans_resnet_block.3} parent=121 // pred_check_branch
              %372 = sbr.rel (0) target = $region130
            $region129: #{trans_resnet_block.3} parent=121 // pred_region
              %s374 = ssub.s32 16, 1
              loop: start=0, step=1, limit=1
              $region131: #{trans_resnet_block.3} parent=129 // loop_pre_header
                _
              $region132: #{trans_resnet_block.3} parent=129 // loop_header
                %s376 = sphi 0, %s380
                %p377 = scmp.ge.s32.totalorder %s376, 1
                %s381 = sphi %s366, %s366
                %s382 = sphi %s361, %s361
              $region133: #{trans_resnet_block.3} parent=129 // loop_header_branch
                %379 = sbr.rel (%p377) target = $region137
              $region134: #{trans_resnet_block.3} parent=129 // loop_body
                %v383 = vld [vmem:[%s381] sm:%s374]
                %384 = vst [vmem:[%s382] sm:%s374] %v383
                %v385 = vld [vmem:[%s381 + $0x8] sm:%s374]
                %386 = vst [vmem:[%s382 + $0x4] sm:%s374] %v385
              $region135: #{trans_resnet_block.3} parent=129 // loop_footer
                %s380 = sadd.s32 1, %s376
              $region136: #{trans_resnet_block.3} parent=129 // loop_footer_branch
                %375 = sbr.rel target = $region132
              $region137: #{trans_resnet_block.3} parent=129 // loop_exit
                _
            $region130: #{trans_resnet_block.3} parent=121 // pred_fallthru
              _
          $region122: #{trans_resnet_block.3} parent=117 // pred_fallthru
            _
          %411 = vnop
        $region118: #{trans_resnet_block.3} parent=31 // pred_fallthru
          _
      $region32: #{trans_resnet_block.3} parent=5 // pred_fallthru
        _
      %p412 = scmp.le.s32.totalorder 1, %s13
      %p413 = scmp.lt.s32.totalorder %s13, 3
      %p414 = pnand %p412, %p413
      %p415 = pneg %p414
      // Predicated region
      $region156: #{trans_resnet_block.3} parent=5 // pred_check
        _
      $region157: #{trans_resnet_block.3} parent=5 // pred_check_branch
        %417 = sbr.rel (%p414) target = $region159
      $region158: #{trans_resnet_block.3} parent=5 // pred_region
        %s418 = ssub.s32 %s13, 1
        %s419 = sand.u32 %s26, 1
        %s420 = sand.u32 %s26, 1
        %s421 = smul.addr %s420, 8
        %s422 = scalar_lea.vmem [#allocation2], %s421
        // Predicated region
        $region160: #{trans_resnet_block.3} parent=158 // pred_check
          %p423 = pneg %p39
        $region161: #{trans_resnet_block.3} parent=158 // pred_check_branch
          %425 = sbr.rel (%p423) target = $region163
        $region162: #{trans_resnet_block.3} parent=158 // pred_region
          _
        $region163: #{trans_resnet_block.3} parent=158 // pred_fallthru
          _
        %s426 = sand.u32 %s58, 1
        %s427 = sand.u32 %s58, 1
        %s428 = smul.addr %s427, 8
        %s429 = scalar_lea.vmem [#allocation3], %s428
        // Predicated region
        $region164: #{trans_resnet_block.3} parent=158 // pred_check
          %p430 = pneg %p71
        $region165: #{trans_resnet_block.3} parent=158 // pred_check_branch
          %432 = sbr.rel (%p430) target = $region167
        $region166: #{trans_resnet_block.3} parent=158 // pred_region
          _
        $region167: #{trans_resnet_block.3} parent=158 // pred_fallthru
          _
        %s433 = sand.u32 %s90, 1
        %s434 = sand.u32 %s90, 1
        %s435 = smul.addr %s434, 8
        %s436 = scalar_lea.vmem [#allocation4], %s435
        // Predicated region
        $region168: #{trans_resnet_block.3} parent=158 // pred_check
          %p437 = pneg %p103
        $region169: #{trans_resnet_block.3} parent=158 // pred_check_branch
          %439 = sbr.rel (%p437) target = $region171
        $region170: #{trans_resnet_block.3} parent=158 // pred_region
          _
        $region171: #{trans_resnet_block.3} parent=158 // pred_fallthru
          _
        %s440 = sand.u32 %s26, 1
        %s441 = sand.u32 %s26, 1
        %s442 = smul.addr %s441, 8
        %s443 = scalar_lea.vmem [#allocation2], %s442
        %p444 = pneg %p39
        %p445 = pneg %p36
        %s446 = sand.u32 %s58, 1
        %s447 = sand.u32 %s58, 1
        %s448 = smul.addr %s447, 8
        %s449 = scalar_lea.vmem [#allocation3], %s448
        %p450 = pneg %p71
        %p451 = pneg %p68
        %s452 = sand.u32 %s90, 1
        %s453 = sand.u32 %s90, 1
        %s454 = smul.addr %s453, 8
        %s455 = scalar_lea.vmem [#allocation4], %s454
        %p456 = pneg %p103
        %p457 = pneg %p100
        %p458 = pneg %p124
        %p459 = pneg %p121
        %p460 = pneg %p145
        %p461 = pneg %p142
        %p462 = pneg %p166
        %p463 = pneg %p163
        %p464 = pneg %p187
        %p465 = pneg %p184
        %p466 = pneg %p213
        %p467 = pneg %p210
        %s468 = sand.u32 %s200, 1
        %s469 = sand.u32 %s200, 1
        %s470 = smul.addr %s469, 32
        %s471 = scalar_lea.vmem [#allocation5], %s470
        %s472 = ssub.s32 %s18, 1
        %p473 = scmp.gt.s32.totalorder %s472, 0
        %s474 = scalar_select %p473, %s472, 0
        %s475 = sadd.s32 %s18, 1
        %p476 = scmp.lt.s32.totalorder %s475, 1
        %s477 = scalar_select %p476, %s475, 1
        %p479 = scmp.eq.s32.totalorder %s18, 0
        %p480 = scmp.eq.s32.totalorder %s18, 1
        %v481 = vld [vmem:[%s3] sm:$0x1]
        %v482 = vld [vmem:[%s3 + $0x1] sm:$0x1]
        %v483 = vld [vmem:[%s3 + $0x2] sm:$0x1]
        %v484 = vld [vmem:[%s3 + $0x3] sm:$0x1]
        %v485 = vld [vmem:[%s3 + $0x4] sm:$0x1]
        %v486 = vld [vmem:[%s3 + $0x5] sm:$0x1]
        %v487 = vld [vmem:[%s3 + $0x6] sm:$0x1]
        %v488 = vld [vmem:[%s4] sm:$0xff]
        %v489 = vld [vmem:[%s4 + $0x8] sm:$0xf]
        %v490 = vld [vmem:[%s5] sm:$0xff]
        %v491 = vld [vmem:[%s5 + $0x8] sm:$0xf]
        %v492 = vld [vmem:[%s5 + $0xc] sm:$0xff]
        %v493 = vld [vmem:[%s5 + $0x14] sm:$0xf]
        %v494 = vld [vmem:[%s5 + $0x18] sm:$0xff]
        %v495 = vld [vmem:[%s5 + $0x20] sm:$0xf]
        %v496 = vld [vmem:[%s5 + $0x24] sm:$0xff]
        %v497 = vld [vmem:[%s5 + $0x2c] sm:$0xf]
        %v498 = vld [vmem:[%s5 + $0x30] sm:$0xff]
        %v499 = vld [vmem:[%s5 + $0x38] sm:$0xf]
        %v500 = vld [vmem:[%s5 + $0x3c] sm:$0xff]
        %v501 = vld [vmem:[%s5 + $0x44] sm:$0xf]
        %v502 = vld [vmem:[%s5 + $0x48] sm:$0xff]
        %v503 = vld [vmem:[%s5 + $0x50] sm:$0xf]
        %v504 = vld [vmem:[%s5 + $0x54] sm:$0xff]
        %v505 = vld [vmem:[%s5 + $0x5c] sm:$0xf]
        %v506 = vld [vmem:[%s5 + $0x60] sm:$0xff]
        %v507 = vld [vmem:[%s5 + $0x68] sm:$0xf]
        %v508 = vld [vmem:[%s5 + $0x6c] sm:$0xff]
        %v509 = vld [vmem:[%s5 + $0x74] sm:$0xf]
        %v510 = vld [vmem:[%s5 + $0x78] sm:$0xff]
        %v511 = vld [vmem:[%s5 + $0x80] sm:$0xf]
        %v512 = vld [vmem:[%s5 + $0x84] sm:$0xff]
        %v513 = vld [vmem:[%s5 + $0x8c] sm:$0xf]
        %v514 = vld [vmem:[%s5 + $0x90] sm:$0xff]
        %v515 = vld [vmem:[%s5 + $0x98] sm:$0xf]
        %v516 = vld [vmem:[%s5 + $0x9c] sm:$0xff]
        %v517 = vld [vmem:[%s5 + $0xa4] sm:$0xf]
        %v518 = vld [vmem:[%s5 + $0xa8] sm:$0xff]
        %v519 = vld [vmem:[%s5 + $0xb0] sm:$0xf]
        %v520 = vld [vmem:[%s5 + $0xb4] sm:$0xff]
        %v521 = vld [vmem:[%s5 + $0xbc] sm:$0xf]
        %v522 = vld [vmem:[%s6] sm:$0xff]
        %v523 = vld [vmem:[%s6 + $0x8] sm:$0xf]
        %v524 = vld [vmem:[%s422] sm:$0xf]
        %v525 = vld [vmem:[%s422 + $0x4] sm:$0xf]
        %v526 = vunpack.c.l.bf16 %v524
        %v527 = vunpack.c.l.bf16 %v525
        %v528 = vld [vmem:[%s429] sm:$0xf]
        %v529 = vld [vmem:[%s429 + $0x4] sm:$0xf]
        %v530 = vunpack.c.l.bf16 %v528
        %v531 = vunpack.c.l.bf16 %v529
        %v532 = vld [vmem:[%s436] sm:$0xf]
        %v533 = vld [vmem:[%s436 + $0x4] sm:$0xf]
        %v534 = vunpack.c.l.bf16 %v532
        %v535 = vunpack.c.l.bf16 %v533
        %v536 = vpack.c.bf16 %v527, %v526
        %v539 = vunpack.c.l.b16 %v522
        %v540 = vunpack.c.h.b16 %v522
        %v541 = vunpack.c.l.b16 %v523
        %v542 = vpack.c.b16 %v539, %v539
        %v543 = vpack.c.b16 %v540, %v540
        %v544 = vpack.c.b16 %v541, %v541
        %vm545 = vcmask 64512
        %v547 = vsel %vm545, %v536, 0
        %vm549 = vcmask 1043456
        %v551 = vsel %vm549, %v542, 0
        %v554 = vsel %vm549, %v543, 0
        %v557 = vsel %vm549, %v544, 0
        %559 = vmatpush.bf16.msra.mxu0 0
        %560 = vmatpush.bf16.msra.mxu0 0
        %561 = vmatpush.bf16.msra.mxu0 0
        %562 = vmatpush.bf16.msra.mxu0 0
        %563 = vmatpush.bf16.msra.mxu0 0
        %564 = vmatpush.bf16.msra.mxu0 0
        %565 = vmatpush.bf16.msra.mxu0 0
        %566 = vmatpush.bf16.msra.mxu0 %v551
        %567 = vmatmul.bf16.gmra.mxu0 %v547
        %v568 = vpop.f32.mrf.mxu0
        %v569 = vadd.f32 0.0, %v568
        %v570 = vpop.f32.mrf.mxu0
        %v571 = vadd.f32 0.0, %v570
        %572 = vdwg.mxu0
        %573 = vmatpush.bf16.msra.mxu0 0
        %574 = vmatpush.bf16.msra.mxu0 0
        %575 = vmatpush.bf16.msra.mxu0 0
        %576 = vmatpush.bf16.msra.mxu0 0
        %577 = vmatpush.bf16.msra.mxu0 0
        %578 = vmatpush.bf16.msra.mxu0 0
        %579 = vmatpush.bf16.msra.mxu0 0
        %580 = vmatpush.bf16.msra.mxu0 %v554
        %581 = vmatmul.bf16.gmra.mxu0 %v547
        %v582 = vpop.f32.mrf.mxu0
        %v583 = vadd.f32 0.0, %v582
        %v584 = vpop.f32.mrf.mxu0
        %v585 = vadd.f32 0.0, %v584
        %586 = vdwg.mxu0
        %587 = vmatpush.bf16.msra.mxu0 0
        %588 = vmatpush.bf16.msra.mxu0 0
        %589 = vmatpush.bf16.msra.mxu0 0
        %590 = vmatpush.bf16.msra.mxu0 0
        %591 = vmatpush.bf16.msra.mxu0 0
        %592 = vmatpush.bf16.msra.mxu0 0
        %593 = vmatpush.bf16.msra.mxu0 0
        %594 = vmatpush.bf16.msra.mxu0 %v557
        %595 = vmatmul.bf16.gmra.mxu0 %v547
        %v596 = vpop.f32.mrf.mxu0
        %v597 = vadd.f32 0.0, %v596
        %v598 = vpop.f32.mrf.mxu0
        %v599 = vadd.f32 0.0, %v598
        %600 = vdwg.mxu0
        %v601 = vpack.c.bf16 %v535, %v534
        %v603 = vsel %vm545, %v601, 0
        %v606 = vsel %vm549, %v522, 0
        %608 = vmatpush.bf16.msra.mxu0 0
        %609 = vmatpush.bf16.msra.mxu0 0
        %610 = vmatpush.bf16.msra.mxu0 0
        %611 = vmatpush.bf16.msra.mxu0 0
        %612 = vmatpush.bf16.msra.mxu0 0
        %613 = vmatpush.bf16.msra.mxu0 0
        %614 = vmatpush.bf16.msra.mxu0 0
        %615 = vmatpush.bf16.msra.mxu0 %v606
        %616 = vmatmul.bf16.gmra.mxu0 %v603
        %v617 = vpop.f32.mrf.mxu0
        %v618 = vadd.f32 0.0, %v617
        %v619 = vpop.f32.mrf.mxu0
        %v620 = vadd.f32 0.0, %v619
        %621 = vdwg.mxu0
        %s622 = scalar_select %p480, 1, 0
        %v623 = vstv %s622
        %vm624 = vcmp.eq.s32.totalorder %v623, 1
        %v625 = vsel %vm624, 0.0, %v618
        %v626 = vsel %vm624, 0.0, %v620
        %v627 = vperm.slane %v481, 0
        %v628 = vmul.f32 %v526, %v627
        %v629 = vmul.f32 %v527, %v627
        %v630 = vperm.slane %v482, 0
        %v631 = vadd.f32 %v628, %v630
        %v632 = vadd.f32 %v629, %v630
        %vm633 = vcmp.ge.f32.partialorder %v631, 0.0
        %vm634 = vcmp.ge.f32.partialorder %v632, 0.0
        %v635 = vmul.f32 %v631, 0.2
        %v636 = vmul.f32 %v632, 0.2
        %v637 = vsel %vm633, %v631, %v635
        %v638 = vsel %vm634, %v632, %v636
        %v639 = vpack.c.bf16 %v638, %v637
        %v642 = vunpack.c.l.b16 %v488
        %v643 = vunpack.c.h.b16 %v488
        %v644 = vunpack.c.l.b16 %v489
        %v645 = vpack.c.b16 %v642, %v642
        %v646 = vpack.c.b16 %v643, %v643
        %v647 = vpack.c.b16 %v644, %v644
        %v649 = vsel %vm545, %v639, 0
        %v652 = vsel %vm549, %v645, 0
        %v655 = vsel %vm549, %v646, 0
        %v658 = vsel %vm549, %v647, 0
        %660 = vmatpush.bf16.msra.mxu0 0
        %661 = vmatpush.bf16.msra.mxu0 0
        %662 = vmatpush.bf16.msra.mxu0 0
        %663 = vmatpush.bf16.msra.mxu0 0
        %664 = vmatpush.bf16.msra.mxu0 0
        %665 = vmatpush.bf16.msra.mxu0 0
        %666 = vmatpush.bf16.msra.mxu0 0
        %667 = vmatpush.bf16.msra.mxu0 %v652
        %668 = vmatmul.bf16.gmra.mxu0 %v649
        %v669 = vpop.f32.mrf.mxu0
        %v670 = vadd.f32 0.0, %v669
        %v671 = vpop.f32.mrf.mxu0
        %v672 = vadd.f32 0.0, %v671
        %673 = vdwg.mxu0
        %674 = vmatpush.bf16.msra.mxu0 0
        %675 = vmatpush.bf16.msra.mxu0 0
        %676 = vmatpush.bf16.msra.mxu0 0
        %677 = vmatpush.bf16.msra.mxu0 0
        %678 = vmatpush.bf16.msra.mxu0 0
        %679 = vmatpush.bf16.msra.mxu0 0
        %680 = vmatpush.bf16.msra.mxu0 0
        %681 = vmatpush.bf16.msra.mxu0 %v655
        %682 = vmatmul.bf16.gmra.mxu0 %v649
        %v683 = vpop.f32.mrf.mxu0
        %v684 = vadd.f32 0.0, %v683
        %v685 = vpop.f32.mrf.mxu0
        %v686 = vadd.f32 0.0, %v685
        %687 = vdwg.mxu0
        %688 = vmatpush.bf16.msra.mxu0 0
        %689 = vmatpush.bf16.msra.mxu0 0
        %690 = vmatpush.bf16.msra.mxu0 0
        %691 = vmatpush.bf16.msra.mxu0 0
        %692 = vmatpush.bf16.msra.mxu0 0
        %693 = vmatpush.bf16.msra.mxu0 0
        %694 = vmatpush.bf16.msra.mxu0 0
        %695 = vmatpush.bf16.msra.mxu0 %v658
        %696 = vmatmul.bf16.gmra.mxu0 %v649
        %v697 = vpop.f32.mrf.mxu0
        %v698 = vadd.f32 0.0, %v697
        %v699 = vpop.f32.mrf.mxu0
        %v700 = vadd.f32 0.0, %v699
        %701 = vdwg.mxu0
        %v702 = vmul.f32 %v530, %v627
        %v703 = vmul.f32 %v534, %v627
        %v704 = vmul.f32 %v531, %v627
        %v705 = vmul.f32 %v535, %v627
        %v706 = vadd.f32 %v702, %v630
        %v707 = vadd.f32 %v703, %v630
        %v708 = vadd.f32 %v704, %v630
        %v709 = vadd.f32 %v705, %v630
        %vm710 = vcmp.ge.f32.partialorder %v706, 0.0
        %vm711 = vcmp.ge.f32.partialorder %v707, 0.0
        %vm712 = vcmp.ge.f32.partialorder %v708, 0.0
        %vm713 = vcmp.ge.f32.partialorder %v709, 0.0
        %v714 = vmul.f32 %v706, 0.2
        %v715 = vmul.f32 %v707, 0.2
        %v716 = vmul.f32 %v708, 0.2
        %v717 = vmul.f32 %v709, 0.2
        %v718 = vsel %vm710, %v706, %v714
        %v719 = vsel %vm711, %v707, %v715
        %v720 = vsel %vm712, %v708, %v716
        %v721 = vsel %vm713, %v709, %v717
        %v722 = vpack.c.bf16 %v719, %v718
        %v723 = vpack.c.bf16 %v721, %v720
        %v725 = vsel %vm545, %v722, 0
        %v728 = vsel %vm545, %v723, 0
        %730 = vmatpush.bf16.msra.mxu0 0
        %731 = vmatpush.bf16.msra.mxu0 0
        %732 = vmatpush.bf16.msra.mxu0 0
        %733 = vmatpush.bf16.msra.mxu0 0
        %734 = vmatpush.bf16.msra.mxu0 0
        %735 = vmatpush.bf16.msra.mxu0 0
        %736 = vmatpush.bf16.msra.mxu0 0
        %737 = vmatpush.bf16.msra.mxu0 %v652
        %738 = vmatmul.bf16.gmra.mxu0 %v725
        %v739 = vpop.f32.mrf.mxu0
        %v740 = vpop.f32.mrf.mxu0
        %v741 = vadd.f32 0.0, %v740
        %742 = vmatmul.bf16.gmra.mxu0 %v728
        %v743 = vpop.f32.mrf.mxu0
        %v744 = vpop.f32.mrf.mxu0
        %v745 = vadd.f32 0.0, %v744
        %746 = vdwg.mxu0
        %747 = vmatpush.bf16.msra.mxu0 0
        %748 = vmatpush.bf16.msra.mxu0 0
        %749 = vmatpush.bf16.msra.mxu0 0
        %750 = vmatpush.bf16.msra.mxu0 0
        %751 = vmatpush.bf16.msra.mxu0 0
        %752 = vmatpush.bf16.msra.mxu0 0
        %753 = vmatpush.bf16.msra.mxu0 0
        %754 = vmatpush.bf16.msra.mxu0 %v655
        %755 = vmatmul.bf16.gmra.mxu0 %v725
        %v756 = vpop.f32.mrf.mxu0
        %v757 = vpop.f32.mrf.mxu0
        %v758 = vadd.f32 0.0, %v757
        %759 = vmatmul.bf16.gmra.mxu0 %v728
        %v760 = vpop.f32.mrf.mxu0
        %v761 = vpop.f32.mrf.mxu0
        %v762 = vadd.f32 0.0, %v761
        %763 = vdwg.mxu0
        %764 = vmatpush.bf16.msra.mxu0 0
        %765 = vmatpush.bf16.msra.mxu0 0
        %766 = vmatpush.bf16.msra.mxu0 0
        %767 = vmatpush.bf16.msra.mxu0 0
        %768 = vmatpush.bf16.msra.mxu0 0
        %769 = vmatpush.bf16.msra.mxu0 0
        %770 = vmatpush.bf16.msra.mxu0 0
        %771 = vmatpush.bf16.msra.mxu0 %v658
        %772 = vmatmul.bf16.gmra.mxu0 %v725
        %v773 = vpop.f32.mrf.mxu0
        %v774 = vadd.f32 0.0, %v773
        %v775 = vpop.f32.mrf.mxu0
        %776 = vmatmul.bf16.gmra.mxu0 %v728
        %v777 = vpop.f32.mrf.mxu0
        %v778 = vadd.f32 0.0, %v777
        %v779 = vpop.f32.mrf.mxu0
        %780 = vdwg.mxu0
        %v781 = vsel %vm624, 0.0, %v741
        %v782 = vsel %vm624, 0.0, %v758
        %v783 = vsel %vm624, 0.0, %v745
        %v784 = vsel %vm624, 0.0, %v762
        %v785 = vperm.slane %v485, 0
        %v786 = vadd.f32 %v684, %v785
        %v787 = vadd.f32 %v686, %v785
        %v790 = vrot.slane %v670, 1
        %v791 = vrot.slane %v672, 1
        %v796 = vrot.slane %v781, 1
        %v797 = vrot.slane %v783, 1
        %vm800 = vcmask 1046528
        %v801 = vsel %vm800, %v790, %v796
        %v802 = vsel %vm800, %v791, %v797
        %v803 = vadd.f32 %v698, %v801
        %v804 = vadd.f32 %v700, %v802
        %v805 = vadd.f32 %v803, %v785
        %v806 = vadd.f32 %v804, %v785
        %v807 = vperm.slane %v483, 0
        %v808 = vmul.f32 %v786, %v807
        %v809 = vmul.f32 %v787, %v807
        %v810 = vperm.slane %v484, 0
        %v811 = vadd.f32 %v808, %v810
        %v812 = vadd.f32 %v809, %v810
        %vm813 = vcmp.ge.f32.partialorder %v811, 0.0
        %vm814 = vcmp.ge.f32.partialorder %v812, 0.0
        %v815 = vmul.f32 %v811, 0.2
        %v816 = vmul.f32 %v812, 0.2
        %v817 = vsel %vm813, %v811, %v815
        %v818 = vsel %vm814, %v812, %v816
        %v819 = vmul.f32 %v805, %v807
        %v820 = vmul.f32 %v806, %v807
        %v821 = vadd.f32 %v819, %v810
        %v822 = vadd.f32 %v820, %v810
        %vm823 = vcmp.ge.f32.partialorder %v821, 0.0
        %vm824 = vcmp.ge.f32.partialorder %v822, 0.0
        %v825 = vmul.f32 %v821, 0.2
        %v826 = vmul.f32 %v822, 0.2
        %v827 = vsel %vm823, %v821, %v825
        %v828 = vsel %vm824, %v822, %v826
        %v829 = vadd.f32 %v774, %v790
        %v830 = vadd.f32 %v778, %v791
        %v832 = vrot.slane %v485, 1
        %v834 = vadd.f32 %v829, %v832
        %v835 = vadd.f32 %v830, %v832
        %v837 = vrot.slane %v483, 1
        %v839 = vmul.f32 %v834, %v837
        %v840 = vmul.f32 %v835, %v837
        %v842 = vrot.slane %v484, 1
        %v844 = vadd.f32 %v839, %v842
        %v845 = vadd.f32 %v840, %v842
        %vm846 = vcmp.ge.f32.partialorder %v844, 0.0
        %vm847 = vcmp.ge.f32.partialorder %v845, 0.0
        %v848 = vmul.f32 %v844, 0.2
        %v849 = vmul.f32 %v845, 0.2
        %v850 = vsel %vm846, %v844, %v848
        %v851 = vsel %vm847, %v845, %v849
        %s852 = scalar_select %p479, 1, 0
        %v853 = vstv %s852
        %vm854 = vcmp.eq.s32.totalorder %v853, 1
        %v855 = vsel %vm854, 0.0, %v850
        %v856 = vsel %vm854, 0.0, %v851
        %v857 = vadd.f32 %v782, %v485
        %v858 = vadd.f32 %v784, %v485
        %v859 = vmul.f32 %v857, %v483
        %v860 = vmul.f32 %v858, %v483
        %v861 = vadd.f32 %v859, %v484
        %v862 = vadd.f32 %v860, %v484
        %vm863 = vcmp.ge.f32.partialorder %v861, 0.0
        %vm864 = vcmp.ge.f32.partialorder %v862, 0.0
        %v865 = vmul.f32 %v861, 0.2
        %v866 = vmul.f32 %v862, 0.2
        %v867 = vsel %vm863, %v861, %v865
        %v868 = vsel %vm864, %v862, %v866
        %v869 = vsel %vm624, 0.0, %v867
        %v870 = vsel %vm624, 0.0, %v868
        %v873 = vrot.slane %v855, 7
        %v874 = vrot.slane %v856, 7
        %v879 = vrot.slane %v869, 7
        %v880 = vrot.slane %v870, 7
        %vm883 = vcmask 1040384
        %v884 = vsel %vm883, %v873, %v879
        %v885 = vsel %vm883, %v874, %v880
        %vm886 = vcmask 1041408
        %v887 = vsel %vm886, %v884, 0.0
        %v888 = vsel %vm886, %v885, 0.0
        %v889 = vpack.c.bf16 %v827, %v817
        %v890 = vpack.c.bf16 %v818, %v887
        %v891 = vpack.c.bf16 %v888, %v828
        %v924 = vunpack.c.l.b16 %v490
        %v925 = vunpack.c.h.b16 %v490
        %v926 = vunpack.c.l.b16 %v491
        %v927 = vunpack.c.l.b16 %v492
        %v928 = vunpack.c.h.b16 %v492
        %v929 = vunpack.c.l.b16 %v493
        %v930 = vunpack.c.l.b16 %v494
        %v931 = vunpack.c.h.b16 %v494
        %v932 = vunpack.c.l.b16 %v495
        %v933 = vunpack.c.l.b16 %v496
        %v934 = vunpack.c.h.b16 %v496
        %v935 = vunpack.c.l.b16 %v497
        %v936 = vunpack.c.l.b16 %v498
        %v937 = vunpack.c.h.b16 %v498
        %v938 = vunpack.c.l.b16 %v499
        %v939 = vunpack.c.l.b16 %v500
        %v940 = vunpack.c.h.b16 %v500
        %v941 = vunpack.c.l.b16 %v501
        %v942 = vunpack.c.l.b16 %v502
        %v943 = vunpack.c.h.b16 %v502
        %v944 = vunpack.c.l.b16 %v503
        %v945 = vunpack.c.l.b16 %v504
        %v946 = vunpack.c.h.b16 %v504
        %v947 = vunpack.c.l.b16 %v505
        %v948 = vunpack.c.l.b16 %v506
        %v949 = vunpack.c.h.b16 %v506
        %v950 = vunpack.c.l.b16 %v507
        %v951 = vunpack.c.l.b16 %v508
        %v952 = vunpack.c.h.b16 %v508
        %v953 = vunpack.c.l.b16 %v509
        %v954 = vunpack.c.l.b16 %v510
        %v955 = vunpack.c.h.b16 %v510
        %v956 = vunpack.c.l.b16 %v511
        %v957 = vunpack.c.l.b16 %v512
        %v958 = vunpack.c.h.b16 %v512
        %v959 = vunpack.c.l.b16 %v513
        %v960 = vunpack.c.l.b16 %v514
        %v961 = vunpack.c.h.b16 %v514
        %v962 = vunpack.c.l.b16 %v515
        %v963 = vunpack.c.l.b16 %v516
        %v964 = vunpack.c.h.b16 %v516
        %v965 = vunpack.c.l.b16 %v517
        %v966 = vunpack.c.l.b16 %v518
        %v967 = vunpack.c.h.b16 %v518
        %v968 = vunpack.c.l.b16 %v519
        %v969 = vunpack.c.l.b16 %v520
        %v970 = vunpack.c.h.b16 %v520
        %v971 = vunpack.c.l.b16 %v521
        %v972 = vpack.c.b16 %v927, %v924
        %v973 = vpack.c.b16 %v928, %v925
        %v974 = vpack.c.b16 %v929, %v926
        %v975 = vpack.c.b16 %v933, %v930
        %v976 = vpack.c.b16 %v934, %v931
        %v977 = vpack.c.b16 %v935, %v932
        %v978 = vpack.c.b16 %v939, %v936
        %v979 = vpack.c.b16 %v940, %v937
        %v980 = vpack.c.b16 %v941, %v938
        %v981 = vpack.c.b16 %v945, %v942
        %v982 = vpack.c.b16 %v946, %v943
        %v983 = vpack.c.b16 %v947, %v944
        %v984 = vpack.c.b16 %v951, %v948
        %v985 = vpack.c.b16 %v952, %v949
        %v986 = vpack.c.b16 %v953, %v950
        %v987 = vpack.c.b16 %v957, %v954
        %v988 = vpack.c.b16 %v958, %v955
        %v989 = vpack.c.b16 %v959, %v956
        %v990 = vpack.c.b16 %v963, %v960
        %v991 = vpack.c.b16 %v964, %v961
        %v992 = vpack.c.b16 %v965, %v962
        %v993 = vpack.c.b16 %v969, %v966
        %v994 = vpack.c.b16 %v970, %v967
        %v995 = vpack.c.b16 %v971, %v968
        %1020 = vmatpush.bf16.msra.mxu0 %v993
        %1021 = vmatpush.bf16.msra.mxu0 %v990
        %1022 = vmatpush.bf16.msra.mxu0 %v987
        %1023 = vmatpush.bf16.msra.mxu0 %v984
        %1024 = vmatpush.bf16.msra.mxu0 %v981
        %1025 = vmatpush.bf16.msra.mxu0 %v978
        %1026 = vmatpush.bf16.msra.mxu0 %v975
        %1027 = vmatpush.bf16.msra.mxu0 %v972
        %1028 = vmatmul.bf16.gmra.mxu0 %v889
        %v1029 = vpop.f32.mrf.mxu0
        %v1030 = vadd.f32 0.0, %v1029
        %v1031 = vpop.f32.mrf.mxu0
        %v1032 = vadd.f32 0.0, %v1031
        %1033 = vmatmul.bf16.gmra.mxu0 %v890
        %v1034 = vpop.f32.mrf.mxu0
        %v1035 = vadd.f32 0.0, %v1034
        %v1036 = vpop.f32.mrf.mxu0
        %v1037 = vadd.f32 0.0, %v1036
        %1038 = vmatmul.bf16.gmra.mxu0 %v891
        %v1039 = vpop.f32.mrf.mxu0
        %v1040 = vadd.f32 0.0, %v1039
        %v1041 = vpop.f32.mrf.mxu0
        %v1042 = vadd.f32 0.0, %v1041
        %1043 = vdwg.mxu0
        %1044 = vmatpush.bf16.msra.mxu0 %v994
        %1045 = vmatpush.bf16.msra.mxu0 %v991
        %1046 = vmatpush.bf16.msra.mxu0 %v988
        %1047 = vmatpush.bf16.msra.mxu0 %v985
        %1048 = vmatpush.bf16.msra.mxu0 %v982
        %1049 = vmatpush.bf16.msra.mxu0 %v979
        %1050 = vmatpush.bf16.msra.mxu0 %v976
        %1051 = vmatpush.bf16.msra.mxu0 %v973
        %1052 = vmatmul.bf16.gmra.mxu0 %v889
        %v1053 = vpop.f32.mrf.mxu0
        %v1054 = vadd.f32 0.0, %v1053
        %v1055 = vpop.f32.mrf.mxu0
        %v1056 = vadd.f32 0.0, %v1055
        %1057 = vmatmul.bf16.gmra.mxu0 %v890
        %v1058 = vpop.f32.mrf.mxu0
        %v1059 = vpop.f32.mrf.mxu0
        %v1060 = vadd.f32 0.0, %v1059
        %1061 = vmatmul.bf16.gmra.mxu0 %v891
        %v1062 = vpop.f32.mrf.mxu0
        %v1063 = vadd.f32 0.0, %v1062
        %v1064 = vpop.f32.mrf.mxu0
        %1065 = vdwg.mxu0
        %1066 = vmatpush.bf16.msra.mxu0 %v995
        %1067 = vmatpush.bf16.msra.mxu0 %v992
        %1068 = vmatpush.bf16.msra.mxu0 %v989
        %1069 = vmatpush.bf16.msra.mxu0 %v986
        %1070 = vmatpush.bf16.msra.mxu0 %v983
        %1071 = vmatpush.bf16.msra.mxu0 %v980
        %1072 = vmatpush.bf16.msra.mxu0 %v977
        %1073 = vmatpush.bf16.msra.mxu0 %v974
        %1074 = vmatmul.bf16.gmra.mxu0 %v889
        %v1075 = vpop.f32.mrf.mxu0
        %v1076 = vadd.f32 0.0, %v1075
        %v1077 = vpop.f32.mrf.mxu0
        %v1078 = vadd.f32 0.0, %v1077
        %1079 = vmatmul.bf16.gmra.mxu0 %v890
        %v1080 = vpop.f32.mrf.mxu0
        %v1081 = vadd.f32 0.0, %v1080
        %v1082 = vpop.f32.mrf.mxu0
        %v1083 = vadd.f32 0.0, %v1082
        %1084 = vmatmul.bf16.gmra.mxu0 %v891
        %v1085 = vpop.f32.mrf.mxu0
        %v1086 = vadd.f32 0.0, %v1085
        %v1087 = vpop.f32.mrf.mxu0
        %v1088 = vadd.f32 0.0, %v1087
        %1089 = vdwg.mxu0
        %v1090 = vperm.slane %v487, 0
        %v1091 = vadd.f32 %v583, %v1090
        %v1092 = vadd.f32 %v585, %v1090
        %v1093 = vperm.slane %v486, 0
        %v1094 = vadd.f32 %v1091, %v1093
        %v1095 = vadd.f32 %v1092, %v1093
        %v1096 = vadd.f32 %v1094, %v1032
        %v1097 = vadd.f32 %v1095, %v1040
        %v1098 = vadd.f32 %v1096, %v1054
        %v1099 = vadd.f32 %v1097, %v1060
        %v1102 = vrot.slane %v1078, 7
        %v1103 = vrot.slane %v1086, 7
        %v1106 = vsel %vm883, %v1081, %v1102
        %v1107 = vsel %vm883, %v1088, %v1103
        %v1108 = vadd.f32 %v1098, %v1106
        %v1109 = vadd.f32 %v1099, %v1107
        %v1110 = vadd.f32 %v597, %v1090
        %v1111 = vadd.f32 %v599, %v1090
        %v1112 = vadd.f32 %v1110, %v1093
        %v1113 = vadd.f32 %v1111, %v1093
        %v1114 = vadd.f32 %v1112, %v1056
        %v1115 = vadd.f32 %v1113, %v1063
        %v1116 = vadd.f32 %v1114, %v1076
        %v1117 = vadd.f32 %v1115, %v1083
        %v1118 = vadd.f32 %v569, %v1030
        %v1119 = vadd.f32 %v571, %v1037
        %v1122 = vrot.slane %v1035, 1
        %v1123 = vrot.slane %v1042, 1
        %v1126 = vadd.f32 %v625, %v1122
        %v1127 = vadd.f32 %v626, %v1123
        %v1130 = vrot.slane %v1118, 1
        %v1131 = vrot.slane %v1119, 1
        %v1136 = vrot.slane %v1126, 1
        %v1137 = vrot.slane %v1127, 1
        %v1140 = vsel %vm800, %v1130, %v1136
        %v1141 = vsel %vm800, %v1131, %v1137
        %v1142 = vadd.f32 %v1116, %v1140
        %v1143 = vadd.f32 %v1117, %v1141
        %1144 = vst [vmem:[%s471] sm:$0xff] %v1108
        %1145 = vst [vmem:[%s471 + $0x8] sm:$0xff] %v1142
        %1146 = vst [vmem:[%s471 + $0x10] sm:$0xff] %v1109
        %1147 = vst [vmem:[%s471 + $0x18] sm:$0xff] %v1143
        %s1148 = sand.u32 %s200, 1
        %s1149 = sand.u32 %s200, 1
        %s1150 = smul.addr %s1149, 32
        %s1151 = scalar_lea.vmem [#allocation5], %s1150
        // Predicated region
        $region172: #{trans_resnet_block.3} parent=158 // pred_check
          %p1152 = pneg %p210
        $region173: #{trans_resnet_block.3} parent=158 // pred_check_branch
          %1154 = sbr.rel (%p1152) target = $region175
        $region174: #{trans_resnet_block.3} parent=158 // pred_region
          %s1155 = smul.addr %s18, 2
          %s1156 = smul.addr %s1155, 8
          %s1157 = scalar_lea.vmem %s7, %s1156
          // Predicated region
          $region176: #{trans_resnet_block.3} parent=174 // pred_check
            _
          $region177: #{trans_resnet_block.3} parent=174 // pred_check_branch
            %1159 = sbr.rel (0) target = $region179
          $region178: #{trans_resnet_block.3} parent=174 // pred_region
            // Predicated region
            $region180: #{trans_resnet_block.3} parent=178 // pred_check
              _
            $region181: #{trans_resnet_block.3} parent=178 // pred_check_branch
              %1161 = sbr.rel (0) target = $region183
            $region182: #{trans_resnet_block.3} parent=178 // pred_region
              loop: start=0, step=1, limit=1
              $region184: #{trans_resnet_block.3} parent=182 // loop_pre_header
                _
              $region185: #{trans_resnet_block.3} parent=182 // loop_header
                %s1163 = sphi 0, %s1167
                %p1164 = scmp.ge.s32.totalorder %s1163, 1
                %s1168 = sphi %s1151, %s1151
                %s1169 = sphi %s1157, %s1157
              $region186: #{trans_resnet_block.3} parent=182 // loop_header_branch
                %1166 = sbr.rel (%p1164) target = $region190
              $region187: #{trans_resnet_block.3} parent=182 // loop_body
                %v1170 = vld [vmem:[%s1168] sm:$0xff]
                %1171 = vst [vmem:[%s1169] sm:$0xff] %v1170
                %v1172 = vld [vmem:[%s1168 + $0x8] sm:$0xff]
                %1173 = vst [vmem:[%s1169 + $0x8] sm:$0xff] %v1172
                %v1174 = vld [vmem:[%s1168 + $0x10] sm:$0xff]
                %1175 = vst [vmem:[%s1169 + $0x20] sm:$0xff] %v1174
                %v1176 = vld [vmem:[%s1168 + $0x18] sm:$0xff]
                %1177 = vst [vmem:[%s1169 + $0x28] sm:$0xff] %v1176
              $region188: #{trans_resnet_block.3} parent=182 // loop_footer
                %s1167 = sadd.s32 1, %s1163
              $region189: #{trans_resnet_block.3} parent=182 // loop_footer_branch
                %1162 = sbr.rel target = $region185
              $region190: #{trans_resnet_block.3} parent=182 // loop_exit
                _
            $region183: #{trans_resnet_block.3} parent=178 // pred_fallthru
              _
            // Predicated region
            $region191: #{trans_resnet_block.3} parent=178 // pred_check
              _
            $region192: #{trans_resnet_block.3} parent=178 // pred_check_branch
              %1179 = sbr.rel target = $region194
            $region193: #{trans_resnet_block.3} parent=178 // pred_region
              _
            $region194: #{trans_resnet_block.3} parent=178 // pred_fallthru
              _
          $region179: #{trans_resnet_block.3} parent=174 // pred_fallthru
            _
          %1180 = vnop
        $region175: #{trans_resnet_block.3} parent=158 // pred_fallthru
          _
      $region159: #{trans_resnet_block.3} parent=5 // pred_fallthru
        _
      %p1181 = scmp.le.s32.totalorder 2, %s13
      // Predicated region
      $region195: #{trans_resnet_block.3} parent=5 // pred_check
        %p1182 = pneg %p1181
      $region196: #{trans_resnet_block.3} parent=5 // pred_check_branch
        %1184 = sbr.rel (%p1182) target = $region198
      $region197: #{trans_resnet_block.3} parent=5 // pred_region
        %s1185 = ssub.s32 %s13, 2
        // Predicated region
        $region199: #{trans_resnet_block.3} parent=197 // pred_check
          %p1186 = pneg %p216
        $region200: #{trans_resnet_block.3} parent=197 // pred_check_branch
          %1188 = sbr.rel (%p1186) target = $region202
        $region201: #{trans_resnet_block.3} parent=197 // pred_region
          %s1189 = sand.u32 %s201, 1
          %s1190 = sand.u32 %s201, 1
          %s1191 = smul.addr %s1190, 32
          %s1192 = scalar_lea.vmem [#allocation5], %s1191
        $region202: #{trans_resnet_block.3} parent=197 // pred_fallthru
          _
      $region198: #{trans_resnet_block.3} parent=5 // pred_fallthru
        _
    $region6: #{trans_resnet_block.3} parent=1 // loop_footer
      %s17 = sadd.s32 1, %s13
    $region7: #{trans_resnet_block.3} parent=1 // loop_footer_branch
      %12 = sbr.rel target = $region3
    $region8: #{trans_resnet_block.3} parent=1 // loop_exit
      _

</llo_original>
